<compile_context>
chip_gen: v6e
topology: v6e:2x2x1
jax: 0.10.0
libtpu: 0.0.40
codegen_flags: <defaults>
</compile_context>

<pallas_src>
import math
import functools

import jax
import jax.numpy as jnp
from jax.experimental import pallas as pl
from jax.experimental.pallas import tpu as pltpu


# ------------------------- fused MHA kernel -------------------------

def _mha_kernel(x_ref, mem_ref, bias_ref,
                wq_ref, bq_ref, wkv_ref, bkv_ref, wof_ref, bof_ref,
                o_ref, kv_ref, *, num_heads):
    qi = pl.program_id(1)

    # ---- K/V projection: once per batch element, cached in VMEM scratch ----
    @pl.when(qi == 0)
    def _():
        mem = mem_ref[0]                                    # [Sm, H] bf16
        kv = jnp.dot(mem, wkv_ref[...],
                     preferred_element_type=jnp.float32) + bkv_ref[...]
        kv_ref[...] = kv.astype(kv_ref.dtype)               # [Sm, 2H] bf16

    x = x_ref[0]                                            # [tq, H]  bf16
    bias = bias_ref[0]                                      # [1, Sm]  f32 additive mask

    tq, H = x.shape
    dh = H // num_heads

    # ---- Q projection (1/sqrt(dh) already folded into Wq/bq on host) ----
    q = (jnp.dot(x, wq_ref[...], preferred_element_type=jnp.float32)
         + bq_ref[...]).astype(jnp.bfloat16)                # [tq, H]

    kv = kv_ref[...]                                        # [Sm, 2H] bf16
    k = kv[:, :H]
    v = kv[:, H:]

    # ---- per-head attention on lane slices (no [S,H]->[nh,S,dh] relayout) ----
    ctx_heads = []
    for h in range(num_heads):                              # static unroll
        sl = slice(h * dh, (h + 1) * dh)
        qh = q[:, sl]                                       # [tq, dh] bf16
        kh = k[:, sl]                                       # [Sm, dh] bf16
        vh = v[:, sl]                                       # [Sm, dh] bf16

        # scores: contract head dim of both operands (no explicit K transpose)
        s = jax.lax.dot_general(qh, kh, (((1,), (1,)), ((), ())),
                                preferred_element_type=jnp.float32)   # [tq, Sm]
        s = s + bias                                        # additive mask (f32)

        m = jnp.max(s, axis=-1, keepdims=True)
        p = jnp.exp(s - m)
        denom = jnp.sum(p, axis=-1, keepdims=True)
        attn = (p * pl.reciprocal(denom, approx=True)).astype(jnp.bfloat16)

        ctx_heads.append(jnp.dot(attn, vh,
                                 preferred_element_type=jnp.float32))  # [tq, dh]

    # head-major lane concat == torch transpose(-3,-2).view merge
    merged = jnp.concatenate(ctx_heads, axis=-1)            # [tq, H] f32

    # ---- fused transform_output + output Linear (folded on host) ----
    out = jnp.dot(merged.astype(jnp.bfloat16), wof_ref[...],
                  preferred_element_type=jnp.float32) + bof_ref[...]
    o_ref[0] = out.astype(o_ref.dtype)


# ------------------------- host-side wrapper -------------------------

def _pick_tq(Sq, cap=512):
    """Largest multiple-of-8 divisor of Sq that is <= cap; whole Sq otherwise."""
    if Sq % 8 == 0:
        return max(t for t in range(8, min(cap, Sq) + 1, 8) if Sq % t == 0)
    # TODO(synk): pad Sq to a multiple of 8 and mask the tail instead.
    return Sq


def _vmem_limit_bytes(tq, Sm, H):
    bf16, f32 = 2, 4
    weights = (2 * H * H + H * 2 * H) * bf16 + 4 * H * f32          # Wq, Wof, Wkv + biases
    tiles = 2 * ((tq * H + Sm * H) * bf16 + Sm * f32 + tq * H * f32)  # double-buffered I/O
    scratch = Sm * 2 * H * bf16
    work = (3 * tq * Sm + 6 * tq * H) * f32                          # scores/p/attn + q/ctx
    est = 2 * weights + tiles + scratch + work
    return int(min(max(4 * est, 8 << 20), 64 << 20))


def masked_mha_forward(params, inputs, memory, memory_mask, num_heads):
    """inputs: [B, Sq, H], memory: [B, Sm, H], memory_mask: [B, Sm] of 0/1."""
    B, Sq, H = inputs.shape
    _, Sm, _ = memory.shape
    dh = H // num_heads
    scale = 1.0 / math.sqrt(dh)

    tq = _pick_tq(Sq)
    grid = (B, Sq // tq)

    if memory_mask is None:
        memory_mask = jnp.ones((B, Sm), jnp.int32)
    # additive mask bias: 0 where kept, -1e30 where masked (finite -> no NaN)
    bias3d = ((memory_mask.astype(jnp.float32) - 1.0) * 1e30).reshape(B, 1, Sm)

    # ---- host weight prep (torch: y = x @ W.T + b) ----
    wq_bf = (params["wq"].T * scale).astype(jnp.bfloat16)                # [H, H], scale folded
    bq = (params["bq"] * scale).reshape(1, H).astype(jnp.float32)
    wkv_bf = jnp.concatenate([params["wk"].T, params["wv"].T], 1).astype(jnp.bfloat16)  # [H, 2H]
    bkv = jnp.concatenate([params["bk"], params["bv"]]).reshape(1, 2 * H).astype(jnp.float32)
    # fold per-head transform_output (dh->dh) into the output Linear (H->H)
    wt_t = params["wt"].T                                                # [dh, dh]
    wo_t = params["wo"].T                                                # [H, H]
    blockdiag_wt = jnp.kron(jnp.eye(num_heads, dtype=wt_t.dtype), wt_t)  # [H, H]
    wof_bf = (blockdiag_wt @ wo_t).astype(jnp.bfloat16)                  # [H, H]
    bof = (jnp.tile(params["bt"], num_heads) @ wo_t
           + params["bo"]).reshape(1, H).astype(jnp.float32)

    # ship activations as bf16 (halves HBM traffic; accumulation stays f32)
    inputs_bf = inputs.astype(jnp.bfloat16)
    memory_bf = memory.astype(jnp.bfloat16)

    kernel = functools.partial(_mha_kernel, num_heads=num_heads)

    return pl.pallas_call(
        kernel,
        out_shape=jax.ShapeDtypeStruct((B, Sq, H), inputs.dtype),
        grid=grid,
        in_specs=[
            pl.BlockSpec((1, tq, H), lambda b, qi: (b, qi, 0)),   # inputs (bf16)
            pl.BlockSpec((1, Sm, H), lambda b, qi: (b, 0, 0)),    # memory (bf16)
            pl.BlockSpec((1, 1, Sm), lambda b, qi: (b, 0, 0)),    # additive mask bias
            pl.BlockSpec((H, H),     lambda b, qi: (0, 0)),       # Wq^T * scale (bf16)
            pl.BlockSpec((1, H),     lambda b, qi: (0, 0)),       # bq * scale
            pl.BlockSpec((H, 2 * H), lambda b, qi: (0, 0)),       # [Wk^T | Wv^T] (bf16)
            pl.BlockSpec((1, 2 * H), lambda b, qi: (0, 0)),       # [bk | bv]
            pl.BlockSpec((H, H),     lambda b, qi: (0, 0)),       # folded Wt/Wo (bf16)
            pl.BlockSpec((1, H),     lambda b, qi: (0, 0)),       # folded bias
        ],
        out_specs=pl.BlockSpec((1, tq, H), lambda b, qi: (b, qi, 0)),
        scratch_shapes=[pltpu.VMEM((Sm, 2 * H), jnp.bfloat16)],    # cached K|V per batch
        compiler_params=pltpu.CompilerParams(
            # qi must be "arbitrary": the K/V scratch is filled at qi==0 and
            # reused by later query tiles of the same batch element.
            dimension_semantics=("parallel", "arbitrary"),
            vmem_limit_bytes=_vmem_limit_bytes(tq, Sm, H)),
    )(inputs_bf, memory_bf, bias3d,
      wq_bf, bq, wkv_bf, bkv, wof_bf, bof)


# ------------------------- pure-JAX reference (torch semantics) -------------------------

def reference_forward(params, inputs, memory, memory_mask, num_heads):
    B, Sq, H = inputs.shape
    Sm = memory.shape[1]
    dh = H // num_heads
    q = inputs @ params["wq"].T + params["bq"]
    k = memory @ params["wk"].T + params["bk"]
    v = memory @ params["wv"].T + params["bv"]
    qh = q.reshape(B, Sq, num_heads, dh).transpose(0, 2, 1, 3)
    kh = k.reshape(B, Sm, num_heads, dh).transpose(0, 2, 1, 3)
    vh = v.reshape(B, Sm, num_heads, dh).transpose(0, 2, 1, 3)
    scores = jnp.einsum("bhqd,bhkd->bhqk", qh, kh) / math.sqrt(dh)
    keep = memory_mask.reshape(B, 1, 1, Sm) > 0
    scores = jnp.where(keep, scores, -jnp.inf)
    attn = jax.nn.softmax(scores, axis=-1)
    ctx = jnp.einsum("bhqk,bhkd->bhqd", attn, vh)
    heads_out = ctx @ params["wt"].T + params["bt"]
    merged = heads_out.transpose(0, 2, 1, 3).reshape(B, Sq, H)
    return merged @ params["wo"].T + params["bo"]


# ------------------------- params (torch Linear init) -------------------------

def init_params(key, hidden_size, num_heads):
    dh = hidden_size // num_heads
    keys = jax.random.split(key, 10)

    def torch_linear_init(kw, kb, out_f, in_f):
        bound = 1.0 / math.sqrt(in_f)
        w = jax.random.uniform(kw, (out_f, in_f), jnp.float32, -bound, bound)
        b = jax.random.uniform(kb, (out_f,), jnp.float32, -bound, bound)
        return w, b

    wq, bq = torch_linear_init(keys[0], keys[1], hidden_size, hidden_size)
    wk, bk = torch_linear_init(keys[2], keys[3], hidden_size, hidden_size)
    wv, bv = torch_linear_init(keys[4], keys[5], hidden_size, hidden_size)
    wt, bt = torch_linear_init(keys[6], keys[7], dh, dh)   # attention.transform_output
    wo, bo = torch_linear_init(keys[8], keys[9], hidden_size, hidden_size)
    return dict(wq=wq, bq=bq, wk=wk, bk=bk, wv=wv, bv=bv, wt=wt, bt=bt, wo=wo, bo=bo)


if __name__ == "__main__":
    B, S, H, NH = 2, 8, 32, 4  # batch, seq, hidden, num_heads  (head_dim = 8)

    key = jax.random.PRNGKey(0)
    k_in, k_mem, k_par = jax.random.split(key, 3)

    inputs = jax.random.normal(k_in, (B, S, H), jnp.float32)
    memory = jax.random.normal(k_mem, (B, S, H), jnp.float32)
    # memory_mask: [B, Sm] of 0/1, last two memory positions of batch 1 masked
    memory_mask = jnp.ones((B, S), jnp.int32).at[1, -2:].set(0)

    params = init_params(k_par, H, NH)

    out = masked_mha_forward(params, inputs, memory, memory_mask, NH)
    out = jax.block_until_ready(out)
    assert out.shape == (B, S, H)
    assert bool(jnp.all(jnp.isfinite(out)))

    # loose tolerance: kernel uses bf16 MXU operands + approx reciprocal
    ref = reference_forward(params, inputs, memory, memory_mask, NH)
    max_err = float(jnp.max(jnp.abs(out - ref)))
    assert max_err < 5e-2, f"max abs error vs reference: {max_err}"

    print("KERNEL_OK")
</pallas_src>

<mosaic_0001>
module attributes {stable_mosaic.version = 11 : i64} {
  func.func @_mha_kernel(%arg0: i32, %arg1: i32, %arg2: memref<1x8x32xbf16, #tpu.memory_space<vmem>>, %arg3: memref<1x8x32xbf16, #tpu.memory_space<vmem>>, %arg4: memref<1x1x8xf32, #tpu.memory_space<vmem>>, %arg5: memref<32x32xbf16, #tpu.memory_space<vmem>>, %arg6: memref<1x32xf32, #tpu.memory_space<vmem>>, %arg7: memref<32x64xbf16, #tpu.memory_space<vmem>>, %arg8: memref<1x64xf32, #tpu.memory_space<vmem>>, %arg9: memref<32x32xbf16, #tpu.memory_space<vmem>>, %arg10: memref<1x32xf32, #tpu.memory_space<vmem>>, %arg11: memref<1x8x32xf32, #tpu.memory_space<vmem>>, %arg12: memref<8x64xbf16, #tpu.memory_space<vmem>>) attributes {dimension_semantics = [#tpu.dimension_semantics<parallel>, #tpu.dimension_semantics<arbitrary>], iteration_bounds = array<i64: 2, 1>, scalar_prefetch = 0 : i64, scratch_operands = 1 : i64, tpu.core_type = #tpu.core_type<tc>, window_params = [{transform_indices = @transform_0, window_bounds = array<i64: 1, 8, 32>}, {transform_indices = @transform_1, window_bounds = array<i64: 1, 8, 32>}, {transform_indices = @transform_2, window_bounds = array<i64: 1, 1, 8>}, {pipeline_mode = #tpu.pipeline_mode<synchronous>, transform_indices = @transform_3, window_bounds = array<i64: 32, 32>}, {pipeline_mode = #tpu.pipeline_mode<synchronous>, transform_indices = @transform_4, window_bounds = array<i64: 1, 32>}, {pipeline_mode = #tpu.pipeline_mode<synchronous>, transform_indices = @transform_5, window_bounds = array<i64: 32, 64>}, {pipeline_mode = #tpu.pipeline_mode<synchronous>, transform_indices = @transform_6, window_bounds = array<i64: 1, 64>}, {pipeline_mode = #tpu.pipeline_mode<synchronous>, transform_indices = @transform_7, window_bounds = array<i64: 32, 32>}, {pipeline_mode = #tpu.pipeline_mode<synchronous>, transform_indices = @transform_8, window_bounds = array<i64: 1, 32>}, {transform_indices = @transform_9, window_bounds = array<i64: 1, 8, 32>}]} {
    %c0_i32 = arith.constant 0 : i32
    %0 = arith.cmpi eq, %arg1, %c0_i32 : i32
    %1 = arith.extui %0 : i1 to i32
    %c0_i32_0 = arith.constant 0 : i32
    %2 = arith.cmpi ne, %1, %c0_i32_0 : i32
    scf.if %2 {
      %c0_36 = arith.constant 0 : index
      %c0_37 = arith.constant 0 : index
      %c0_38 = arith.constant 0 : index
      %98 = vector.load %arg3[%c0_36, %c0_37, %c0_38] : memref<1x8x32xbf16, #tpu.memory_space<vmem>>, vector<1x8x32xbf16>
      %99 = vector.shape_cast %98 : vector<1x8x32xbf16> to vector<8x32xbf16>
      %c0_39 = arith.constant 0 : index
      %c0_40 = arith.constant 0 : index
      %100 = vector.load %arg7[%c0_39, %c0_40] : memref<32x64xbf16, #tpu.memory_space<vmem>>, vector<32x64xbf16>
      %cst_41 = arith.constant dense<0.000000e+00> : vector<8x64xf32>
      %101 = tpu.matmul %99, %100, %cst_41 {dimension_numbers = #tpu.dot_dimension_numbers<[1], [0], [0], [1], [0, 0, 1, 1], [], []>} : vector<8x32xbf16>, vector<32x64xbf16>, vector<8x64xf32> -> vector<8x64xf32>
      %c0_42 = arith.constant 0 : index
      %c0_43 = arith.constant 0 : index
      %102 = vector.load %arg8[%c0_42, %c0_43] : memref<1x64xf32, #tpu.memory_space<vmem>>, vector<1x64xf32>
      %103 = vector.broadcast %102 : vector<1x64xf32> to vector<8x64xf32>
      %104 = arith.addf %101, %103 : vector<8x64xf32>
      %105 = arith.truncf %104 : vector<8x64xf32> to vector<8x64xbf16>
      %c0_44 = arith.constant 0 : index
      %c0_45 = arith.constant 0 : index
      %106 = vector.load %arg12[%c0_44, %c0_45] : memref<8x64xbf16, #tpu.memory_space<vmem>>, vector<8x64xbf16>
      tpu.vector_store %arg12[%c0_44, %c0_45], %105 {strides = array<i32>} : memref<8x64xbf16, #tpu.memory_space<vmem>>, vector<8x64xbf16>,
    } else {
    }
    %c0 = arith.constant 0 : index
    %c0_1 = arith.constant 0 : index
    %c0_2 = arith.constant 0 : index
    %3 = vector.load %arg2[%c0, %c0_1, %c0_2] : memref<1x8x32xbf16, #tpu.memory_space<vmem>>, vector<1x8x32xbf16>
    %4 = vector.shape_cast %3 : vector<1x8x32xbf16> to vector<8x32xbf16>
    %c0_3 = arith.constant 0 : index
    %c0_4 = arith.constant 0 : index
    %c0_5 = arith.constant 0 : index
    %5 = vector.load %arg4[%c0_3, %c0_4, %c0_5] : memref<1x1x8xf32, #tpu.memory_space<vmem>>, vector<1x1x8xf32>
    %6 = vector.shape_cast %5 : vector<1x1x8xf32> to vector<1x8xf32>
    %c0_6 = arith.constant 0 : index
    %c0_7 = arith.constant 0 : index
    %7 = vector.load %arg5[%c0_6, %c0_7] : memref<32x32xbf16, #tpu.memory_space<vmem>>, vector<32x32xbf16>
    %cst = arith.constant dense<0.000000e+00> : vector<8x32xf32>
    %8 = tpu.matmul %4, %7, %cst {dimension_numbers = #tpu.dot_dimension_numbers<[1], [0], [0], [1], [0, 0, 1, 1], [], []>} : vector<8x32xbf16>, vector<32x32xbf16>, vector<8x32xf32> -> vector<8x32xf32>
    %c0_8 = arith.constant 0 : index
    %c0_9 = arith.constant 0 : index
    %9 = vector.load %arg6[%c0_8, %c0_9] : memref<1x32xf32, #tpu.memory_space<vmem>>, vector<1x32xf32>
    %10 = vector.broadcast %9 : vector<1x32xf32> to vector<8x32xf32>
    %11 = arith.addf %8, %10 : vector<8x32xf32>
    %12 = arith.truncf %11 : vector<8x32xf32> to vector<8x32xbf16>
    %c0_10 = arith.constant 0 : index
    %c0_11 = arith.constant 0 : index
    %13 = vector.load %arg12[%c0_10, %c0_11] : memref<8x64xbf16, #tpu.memory_space<vmem>>, vector<8x64xbf16>
    %14 = vector.extract_strided_slice %13 {offsets = [0, 0], sizes = [8, 32], strides = [1, 1]} : vector<8x64xbf16> to vector<8x32xbf16>
    %15 = vector.extract_strided_slice %13 {offsets = [0, 32], sizes = [8, 32], strides = [1, 1]} : vector<8x64xbf16> to vector<8x32xbf16>
    %16 = vector.extract_strided_slice %12 {offsets = [0, 0], sizes = [8, 8], strides = [1, 1]} : vector<8x32xbf16> to vector<8x8xbf16>
    %17 = vector.extract_strided_slice %14 {offsets = [0, 0], sizes = [8, 8], strides = [1, 1]} : vector<8x32xbf16> to vector<8x8xbf16>
    %18 = vector.extract_strided_slice %15 {offsets = [0, 0], sizes = [8, 8], strides = [1, 1]} : vector<8x32xbf16> to vector<8x8xbf16>
    %cst_12 = arith.constant dense<0.000000e+00> : vector<8x8xf32>
    %19 = tpu.matmul %16, %17, %cst_12 {dimension_numbers = #tpu.dot_dimension_numbers<[1], [1], [0], [0], [0, 0, 1, 0], [], []>} : vector<8x8xbf16>, vector<8x8xbf16>, vector<8x8xf32> -> vector<8x8xf32>
    %20 = vector.broadcast %6 : vector<1x8xf32> to vector<8x8xf32>
    %21 = arith.addf %19, %20 : vector<8x8xf32>
    %cst_13 = arith.constant dense<0xFF800000> : vector<8xf32>
    %22 = vector.multi_reduction <maximumf>, %21, %cst_13 [1] : vector<8x8xf32> to vector<8xf32>
    %23 = vector.shape_cast %22 : vector<8xf32> to vector<8x1xf32>
    %24 = vector.broadcast %23 : vector<8x1xf32> to vector<8x8xf32>
    %25 = arith.subf %21, %24 : vector<8x8xf32>
    %26 = math.exp %25 : vector<8x8xf32>
    %cst_14 = arith.constant dense<0.000000e+00> : vector<8xf32>
    %27 = vector.multi_reduction <add>, %26, %cst_14 [1] : vector<8x8xf32> to vector<8xf32>
    %28 = vector.shape_cast %27 : vector<8xf32> to vector<8x1xf32>
    %29 = tpu.reciprocal %28 {approx = true} : vector<8x1xf32> -> vector<8x1xf32>
    %30 = vector.broadcast %29 : vector<8x1xf32> to vector<8x8xf32>
    %31 = arith.mulf %26, %30 : vector<8x8xf32>
    %32 = arith.truncf %31 : vector<8x8xf32> to vector<8x8xbf16>
    %cst_15 = arith.constant dense<0.000000e+00> : vector<8x8xf32>
    %33 = tpu.matmul %32, %18, %cst_15 {dimension_numbers = #tpu.dot_dimension_numbers<[1], [0], [0], [1], [0, 0, 1, 1], [], []>} : vector<8x8xbf16>, vector<8x8xbf16>, vector<8x8xf32> -> vector<8x8xf32>
    %34 = vector.extract_strided_slice %12 {offsets = [0, 8], sizes = [8, 8], strides = [1, 1]} : vector<8x32xbf16> to vector<8x8xbf16>
    %35 = vector.extract_strided_slice %14 {offsets = [0, 8], sizes = [8, 8], strides = [1, 1]} : vector<8x32xbf16> to vector<8x8xbf16>
    %36 = vector.extract_strided_slice %15 {offsets = [0, 8], sizes = [8, 8], strides = [1, 1]} : vector<8x32xbf16> to vector<8x8xbf16>
    %cst_16 = arith.constant dense<0.000000e+00> : vector<8x8xf32>
    %37 = tpu.matmul %34, %35, %cst_16 {dimension_numbers = #tpu.dot_dimension_numbers<[1], [1], [0], [0], [0, 0, 1, 0], [], []>} : vector<8x8xbf16>, vector<8x8xbf16>, vector<8x8xf32> -> vector<8x8xf32>
    %38 = vector.broadcast %6 : vector<1x8xf32> to vector<8x8xf32>
    %39 = arith.addf %37, %38 : vector<8x8xf32>
    %cst_17 = arith.constant dense<0xFF800000> : vector<8xf32>
    %40 = vector.multi_reduction <maximumf>, %39, %cst_17 [1] : vector<8x8xf32> to vector<8xf32>
    %41 = vector.shape_cast %40 : vector<8xf32> to vector<8x1xf32>
    %42 = vector.broadcast %41 : vector<8x1xf32> to vector<8x8xf32>
    %43 = arith.subf %39, %42 : vector<8x8xf32>
    %44 = math.exp %43 : vector<8x8xf32>
    %cst_18 = arith.constant dense<0.000000e+00> : vector<8xf32>
    %45 = vector.multi_reduction <add>, %44, %cst_18 [1] : vector<8x8xf32> to vector<8xf32>
    %46 = vector.shape_cast %45 : vector<8xf32> to vector<8x1xf32>
    %47 = tpu.reciprocal %46 {approx = true} : vector<8x1xf32> -> vector<8x1xf32>
    %48 = vector.broadcast %47 : vector<8x1xf32> to vector<8x8xf32>
    %49 = arith.mulf %44, %48 : vector<8x8xf32>
    %50 = arith.truncf %49 : vector<8x8xf32> to vector<8x8xbf16>
    %cst_19 = arith.constant dense<0.000000e+00> : vector<8x8xf32>
    %51 = tpu.matmul %50, %36, %cst_19 {dimension_numbers = #tpu.dot_dimension_numbers<[1], [0], [0], [1], [0, 0, 1, 1], [], []>} : vector<8x8xbf16>, vector<8x8xbf16>, vector<8x8xf32> -> vector<8x8xf32>
    %52 = vector.extract_strided_slice %12 {offsets = [0, 16], sizes = [8, 8], strides = [1, 1]} : vector<8x32xbf16> to vector<8x8xbf16>
    %53 = vector.extract_strided_slice %14 {offsets = [0, 16], sizes = [8, 8], strides = [1, 1]} : vector<8x32xbf16> to vector<8x8xbf16>
    %54 = vector.extract_strided_slice %15 {offsets = [0, 16], sizes = [8, 8], strides = [1, 1]} : vector<8x32xbf16> to vector<8x8xbf16>
    %cst_20 = arith.constant dense<0.000000e+00> : vector<8x8xf32>
    %55 = tpu.matmul %52, %53, %cst_20 {dimension_numbers = #tpu.dot_dimension_numbers<[1], [1], [0], [0], [0, 0, 1, 0], [], []>} : vector<8x8xbf16>, vector<8x8xbf16>, vector<8x8xf32> -> vector<8x8xf32>
    %56 = vector.broadcast %6 : vector<1x8xf32> to vector<8x8xf32>
    %57 = arith.addf %55, %56 : vector<8x8xf32>
    %cst_21 = arith.constant dense<0xFF800000> : vector<8xf32>
    %58 = vector.multi_reduction <maximumf>, %57, %cst_21 [1] : vector<8x8xf32> to vector<8xf32>
    %59 = vector.shape_cast %58 : vector<8xf32> to vector<8x1xf32>
    %60 = vector.broadcast %59 : vector<8x1xf32> to vector<8x8xf32>
    %61 = arith.subf %57, %60 : vector<8x8xf32>
    %62 = math.exp %61 : vector<8x8xf32>
    %cst_22 = arith.constant dense<0.000000e+00> : vector<8xf32>
    %63 = vector.multi_reduction <add>, %62, %cst_22 [1] : vector<8x8xf32> to vector<8xf32>
    %64 = vector.shape_cast %63 : vector<8xf32> to vector<8x1xf32>
    %65 = tpu.reciprocal %64 {approx = true} : vector<8x1xf32> -> vector<8x1xf32>
    %66 = vector.broadcast %65 : vector<8x1xf32> to vector<8x8xf32>
    %67 = arith.mulf %62, %66 : vector<8x8xf32>
    %68 = arith.truncf %67 : vector<8x8xf32> to vector<8x8xbf16>
    %cst_23 = arith.constant dense<0.000000e+00> : vector<8x8xf32>
    %69 = tpu.matmul %68, %54, %cst_23 {dimension_numbers = #tpu.dot_dimension_numbers<[1], [0], [0], [1], [0, 0, 1, 1], [], []>} : vector<8x8xbf16>, vector<8x8xbf16>, vector<8x8xf32> -> vector<8x8xf32>
    %70 = vector.extract_strided_slice %12 {offsets = [0, 24], sizes = [8, 8], strides = [1, 1]} : vector<8x32xbf16> to vector<8x8xbf16>
    %71 = vector.extract_strided_slice %14 {offsets = [0, 24], sizes = [8, 8], strides = [1, 1]} : vector<8x32xbf16> to vector<8x8xbf16>
    %72 = vector.extract_strided_slice %15 {offsets = [0, 24], sizes = [8, 8], strides = [1, 1]} : vector<8x32xbf16> to vector<8x8xbf16>
    %cst_24 = arith.constant dense<0.000000e+00> : vector<8x8xf32>
    %73 = tpu.matmul %70, %71, %cst_24 {dimension_numbers = #tpu.dot_dimension_numbers<[1], [1], [0], [0], [0, 0, 1, 0], [], []>} : vector<8x8xbf16>, vector<8x8xbf16>, vector<8x8xf32> -> vector<8x8xf32>
    %74 = vector.broadcast %6 : vector<1x8xf32> to vector<8x8xf32>
    %75 = arith.addf %73, %74 : vector<8x8xf32>
    %cst_25 = arith.constant dense<0xFF800000> : vector<8xf32>
    %76 = vector.multi_reduction <maximumf>, %75, %cst_25 [1] : vector<8x8xf32> to vector<8xf32>
    %77 = vector.shape_cast %76 : vector<8xf32> to vector<8x1xf32>
    %78 = vector.broadcast %77 : vector<8x1xf32> to vector<8x8xf32>
    %79 = arith.subf %75, %78 : vector<8x8xf32>
    %80 = math.exp %79 : vector<8x8xf32>
    %cst_26 = arith.constant dense<0.000000e+00> : vector<8xf32>
    %81 = vector.multi_reduction <add>, %80, %cst_26 [1] : vector<8x8xf32> to vector<8xf32>
    %82 = vector.shape_cast %81 : vector<8xf32> to vector<8x1xf32>
    %83 = tpu.reciprocal %82 {approx = true} : vector<8x1xf32> -> vector<8x1xf32>
    %84 = vector.broadcast %83 : vector<8x1xf32> to vector<8x8xf32>
    %85 = arith.mulf %80, %84 : vector<8x8xf32>
    %86 = arith.truncf %85 : vector<8x8xf32> to vector<8x8xbf16>
    %cst_27 = arith.constant dense<0.000000e+00> : vector<8x8xf32>
    %87 = tpu.matmul %86, %72, %cst_27 {dimension_numbers = #tpu.dot_dimension_numbers<[1], [0], [0], [1], [0, 0, 1, 1], [], []>} : vector<8x8xbf16>, vector<8x8xbf16>, vector<8x8xf32> -> vector<8x8xf32>
    %88 = tpu.concatenate %33, %51, %69, %87 in 1 : vector<8x8xf32>, vector<8x8xf32>, vector<8x8xf32>, vector<8x8xf32> -> vector<8x32xf32>
    %89 = arith.truncf %88 : vector<8x32xf32> to vector<8x32xbf16>
    %c0_28 = arith.constant 0 : index
    %c0_29 = arith.constant 0 : index
    %90 = vector.load %arg9[%c0_28, %c0_29] : memref<32x32xbf16, #tpu.memory_space<vmem>>, vector<32x32xbf16>
    %cst_30 = arith.constant dense<0.000000e+00> : vector<8x32xf32>
    %91 = tpu.matmul %89, %90, %cst_30 {dimension_numbers = #tpu.dot_dimension_numbers<[1], [0], [0], [1], [0, 0, 1, 1], [], []>} : vector<8x32xbf16>, vector<32x32xbf16>, vector<8x32xf32> -> vector<8x32xf32>
    %c0_31 = arith.constant 0 : index
    %c0_32 = arith.constant 0 : index
    %92 = vector.load %arg10[%c0_31, %c0_32] : memref<1x32xf32, #tpu.memory_space<vmem>>, vector<1x32xf32>
    %93 = vector.broadcast %92 : vector<1x32xf32> to vector<8x32xf32>
    %94 = arith.addf %91, %93 : vector<8x32xf32>
    %c0_33 = arith.constant 0 : index
    %c0_34 = arith.constant 0 : index
    %c0_35 = arith.constant 0 : index
    %95 = vector.load %arg11[%c0_33, %c0_34, %c0_35] : memref<1x8x32xf32, #tpu.memory_space<vmem>>, vector<1x8x32xf32>
    %96 = vector.shape_cast %95 : vector<1x8x32xf32> to vector<8x32xf32>
    %97 = vector.shape_cast %94 : vector<8x32xf32> to vector<1x8x32xf32>
    tpu.vector_store %arg11[%c0_33, %c0_34, %c0_35], %97 {strides = array<i32>} : memref<1x8x32xf32, #tpu.memory_space<vmem>>, vector<1x8x32xf32>,
    return
  }
  func.func @transform_0(%arg0: i32, %arg1: i32) -> (i32, i32, i32) {
    %c0_i32 = arith.constant 0 : i32
    %c0_i32_0 = arith.constant 0 : i32
    return %arg0, %arg1, %c0_i32 : i32, i32, i32
  }
  func.func @transform_1(%arg0: i32, %arg1: i32) -> (i32, i32, i32) {
    %c0_i32 = arith.constant 0 : i32
    %c0_i32_0 = arith.constant 0 : i32
    %c0_i32_1 = arith.constant 0 : i32
    return %arg0, %c0_i32, %c0_i32_0 : i32, i32, i32
  }
  func.func @transform_2(%arg0: i32, %arg1: i32) -> (i32, i32, i32) {
    %c0_i32 = arith.constant 0 : i32
    %c0_i32_0 = arith.constant 0 : i32
    %c0_i32_1 = arith.constant 0 : i32
    return %arg0, %c0_i32, %c0_i32_0 : i32, i32, i32
  }
  func.func @transform_3(%arg0: i32, %arg1: i32) -> (i32, i32) {
    %c0_i32 = arith.constant 0 : i32
    %c0_i32_0 = arith.constant 0 : i32
    %c0_i32_1 = arith.constant 0 : i32
    return %c0_i32, %c0_i32_0 : i32, i32
  }
  func.func @transform_4(%arg0: i32, %arg1: i32) -> (i32, i32) {
    %c0_i32 = arith.constant 0 : i32
    %c0_i32_0 = arith.constant 0 : i32
    %c0_i32_1 = arith.constant 0 : i32
    return %c0_i32, %c0_i32_0 : i32, i32
  }
  func.func @transform_5(%arg0: i32, %arg1: i32) -> (i32, i32) {
    %c0_i32 = arith.constant 0 : i32
    %c0_i32_0 = arith.constant 0 : i32
    %c0_i32_1 = arith.constant 0 : i32
    return %c0_i32, %c0_i32_0 : i32, i32
  }
  func.func @transform_6(%arg0: i32, %arg1: i32) -> (i32, i32) {
    %c0_i32 = arith.constant 0 : i32
    %c0_i32_0 = arith.constant 0 : i32
    %c0_i32_1 = arith.constant 0 : i32
    return %c0_i32, %c0_i32_0 : i32, i32
  }
  func.func @transform_7(%arg0: i32, %arg1: i32) -> (i32, i32) {
    %c0_i32 = arith.constant 0 : i32
    %c0_i32_0 = arith.constant 0 : i32
    %c0_i32_1 = arith.constant 0 : i32
    return %c0_i32, %c0_i32_0 : i32, i32
  }
  func.func @transform_8(%arg0: i32, %arg1: i32) -> (i32, i32) {
    %c0_i32 = arith.constant 0 : i32
    %c0_i32_0 = arith.constant 0 : i32
    %c0_i32_1 = arith.constant 0 : i32
    return %c0_i32, %c0_i32_0 : i32, i32
  }
  func.func @transform_9(%arg0: i32, %arg1: i32) -> (i32, i32, i32) {
    %c0_i32 = arith.constant 0 : i32
    %c0_i32_0 = arith.constant 0 : i32
    return %arg0, %arg1, %c0_i32 : i32, i32, i32
  }
}

</mosaic_0001>

<llo_original>
// kernel: tpu_custom_call.1
$region0: #{tpu_custom_call.1}
  #allocation0 [shape = 'u32[]', space=smem, size = 0x4, offset = 0x4, fixed_abs, tag = 'smem constant byte address 0x4 - core index']
  #allocation1 [shape = 'u32[144,128]{1,0:T(1,128)}', space=vmem, size = 0x12000, scoped, tag = 'internal scratch']
  #allocation2 [shape = 'bf16[8,64]{1,0:T(8,128)(2,1)}', space=vmem, size = 0x800, scoped, tag = 'scratch operand']
  %s0 = inlined_call_operand.hbm [shape: bf16[2,8,32], index: 0, kind: input, shape index: {}]
  %s1 = inlined_call_operand.hbm [shape: bf16[2,8,32], index: 1, kind: input, shape index: {}]
  %s2 = inlined_call_operand.vmem [shape: f32[2,1,8], index: 2, kind: input, shape index: {}]
  %s3 = inlined_call_operand.hbm [shape: bf16[32,32], index: 3, kind: input, shape index: {}]
  %s4 = inlined_call_operand.vmem [shape: f32[1,32], index: 4, kind: input, shape index: {}]
  %s5 = inlined_call_operand.hbm [shape: bf16[32,64], index: 5, kind: input, shape index: {}]
  %s6 = inlined_call_operand.vmem [shape: f32[1,64], index: 6, kind: input, shape index: {}]
  %s7 = inlined_call_operand.hbm [shape: bf16[32,32], index: 7, kind: input, shape index: {}]
  %s8 = inlined_call_operand.vmem [shape: f32[1,32], index: 8, kind: input, shape index: {}]
  %s9 = inlined_call_operand.hbm [shape: f32[2,8,32], index: 9, kind: output, shape index: {}]
  %s10 = sld [smem:[#allocation0]]
  $region93: #{tpu_custom_call.1} parent=0
    _
  %s12 = ssub.s32 1, %s10
  %s13 = scalar_select 0, %s12, %s10
  $region1: #{tpu_custom_call.1} parent=0
    #allocation3 [shape = 'u8[4096]{0}', space=vmem, size = 0x1000, scoped, tag = 'input window, operand 0']
    #allocation4 [shape = 's32[2]{0}', space=sflag, size = 0x8, scoped, tag = 'scoped memory for tpu_custom_call.1']
    #allocation5 [shape = 's32[2]{0}', space=sflag, size = 0x8, scoped, tag = 'scoped memory for tpu_custom_call.1']
    #allocation6 [shape = 'u8[4096]{0}', space=vmem, size = 0x1000, scoped, tag = 'input window, operand 1']
    #allocation7 [shape = 's32[2]{0}', space=sflag, size = 0x8, scoped, tag = 'scoped memory for tpu_custom_call.1']
    #allocation8 [shape = 'u8[8192]{0}', space=vmem, size = 0x2000, scoped, tag = 'input window, operand 3, single buffered']
    #allocation9 [shape = 'u8[8192]{0}', space=vmem, size = 0x2000, scoped, tag = 'input window, operand 5, single buffered']
    #allocation10 [shape = 's32[1]{0}', space=sflag, size = 0x4, scoped, tag = 'scoped memory for tpu_custom_call.1']
    #allocation11 [shape = 'u8[8192]{0}', space=vmem, size = 0x2000, scoped, tag = 'input window, operand 7, single buffered']
    #allocation12 [shape = 'u8[8192]{0}', space=vmem, size = 0x2000, scoped, tag = 'output window, operand 0']
    %14 = vsyncpa [#allocation4], 0
    %s15 = scalar_lea.sflag [#allocation4], 1
    %16 = vsyncpa %s15, 0
    %17 = vsyncpa [#allocation7], 0
    %s18 = scalar_lea.sflag [#allocation7], 1
    %19 = vsyncpa %s18, 0
    %20 = vsyncpa [#allocation10], 0
    %21 = vsyncpa [#allocation5], 0
    %s22 = scalar_lea.sflag [#allocation5], 1
    %23 = vsyncpa %s22, 0
    loop: start=0, step=1, limit=4
    $region2: #{tpu_custom_call.1} parent=1 // loop_pre_header
      _
    $region3: #{tpu_custom_call.1} parent=1 // loop_header
      %s25 = sphi 0, %s29
      %p26 = scmp.ge.s32.totalorder %s25, 4
      %s32 = sphi 0, %s44
      %s33 = sphi 0, %s40
      %s34 = sphi 0, %s32
      %s35 = sphi 0, %s33
      %s36 = sphi 0, %s34
      %s37 = sphi 0, %s35
      %s49 = sphi 0, %s51
      %s52 = sphi 0, %s49
      %s53 = sphi 0, %s52
      %s69 = sphi 0, %s53
      %s75 = sphi 0, %s77
      %s78 = sphi 0, %s75
      %s79 = sphi 0, %s78
      %s95 = sphi 0, %s79
      %s101 = sphi 0, %s103
      %s104 = sphi 0, %s101
      %s105 = sphi 0, %s104
      %s121 = sphi 0, %s105
      %s125 = sphi 0, %s125
      %s127 = sphi 0, %s125
      %s128 = sphi 0, %s127
      %s142 = sphi 0, %s128
      %s146 = sphi 0, %s146
      %s148 = sphi 0, %s146
      %s149 = sphi 0, %s148
      %s163 = sphi 0, %s149
      %s167 = sphi 0, %s167
      %s169 = sphi 0, %s167
      %s170 = sphi 0, %s169
      %s184 = sphi 0, %s170
      %s188 = sphi 0, %s188
      %s190 = sphi 0, %s188
      %s191 = sphi 0, %s190
      %s205 = sphi 0, %s191
      %s209 = sphi 0, %s209
      %s211 = sphi 0, %s209
      %s212 = sphi 0, %s211
      %s226 = sphi 0, %s212
      %s230 = sphi 0, %s230
      %s232 = sphi 0, %s230
      %s233 = sphi 0, %s232
      %s247 = sphi 0, %s233
      %s255 = sphi 0, %s257
      %s258 = sphi 0, %s255
      %s259 = sphi 0, %s258
      %s275 = sphi 0, %s259
    $region4: #{tpu_custom_call.1} parent=1 // loop_header_branch
      %28 = sbr.rel (%p26) target = $region8
    $region5: #{tpu_custom_call.1} parent=1 // loop_body
      %s30 = ssub.s32 %s25, 1
      %s31 = ssub.s32 %s25, 2
      %s38 = sadd.s32 1, %s33
      %p39 = scmp.ge.s32.totalorder %s38, 1
      %s40 = scalar_select %p39, 0, %s38
      %s41 = sadd.s32 1, %s32
      %s42 = scalar_select %p39, %s41, %s32
      %p43 = scmp.ge.s32.totalorder %s42, 2
      %s44 = scalar_select %p43, 0, %s42
      %s45 = ssub.s32 %s32, %s44
      %s46 = ssub.s32 %s33, %s40
      %s47 = sor.u32 %s45, %s46
      %p48 = scmp.eq.s32.totalorder %s47, 0
      %s50 = sadd.s32 %s49, 1
      %s51 = scalar_select %p48, %s49, %s50
      %p54 = pneg %p48
      %p55 = scmp.eq.s32.totalorder %s25, 1
      %p56 = por %p54, %p55
      %p57 = scmp.ne.s32.totalorder %s49, %s52
      %p58 = scmp.eq.s32.totalorder %s25, 0
      %p59 = por %p57, %p58
      %p60 = scmp.ne.s32.totalorder %s49, %s52
      %p61 = scmp.eq.s32.totalorder %s30, 1
      %p62 = por %p60, %p61
      %p63 = scmp.ne.s32.totalorder %s52, %s53
      %p64 = scmp.eq.s32.totalorder %s30, 0
      %p65 = por %p63, %p64
      %p66 = scmp.ne.s32.totalorder %s52, %s53
      %p67 = scmp.eq.s32.totalorder %s31, 1
      %p68 = por %p66, %p67
      %p70 = scmp.ne.s32.totalorder %s53, %s69
      %p71 = scmp.eq.s32.totalorder %s31, 0
      %p72 = por %p70, %p71
      %s73 = ssub.s32 %s32, %s44
      %p74 = scmp.eq.s32.totalorder %s73, 0
      %s76 = sadd.s32 %s75, 1
      %s77 = scalar_select %p74, %s75, %s76
      %p80 = pneg %p74
      %p81 = scmp.eq.s32.totalorder %s25, 1
      %p82 = por %p80, %p81
      %p83 = scmp.ne.s32.totalorder %s75, %s78
      %p84 = scmp.eq.s32.totalorder %s25, 0
      %p85 = por %p83, %p84
      %p86 = scmp.ne.s32.totalorder %s75, %s78
      %p87 = scmp.eq.s32.totalorder %s30, 1
      %p88 = por %p86, %p87
      %p89 = scmp.ne.s32.totalorder %s78, %s79
      %p90 = scmp.eq.s32.totalorder %s30, 0
      %p91 = por %p89, %p90
      %p92 = scmp.ne.s32.totalorder %s78, %s79
      %p93 = scmp.eq.s32.totalorder %s31, 1
      %p94 = por %p92, %p93
      %p96 = scmp.ne.s32.totalorder %s79, %s95
      %p97 = scmp.eq.s32.totalorder %s31, 0
      %p98 = por %p96, %p97
      %s99 = ssub.s32 %s32, %s44
      %p100 = scmp.eq.s32.totalorder %s99, 0
      %s102 = sadd.s32 %s101, 1
      %s103 = scalar_select %p100, %s101, %s102
      %p106 = pneg %p100
      %p107 = scmp.eq.s32.totalorder %s25, 1
      %p108 = por %p106, %p107
      %p109 = scmp.ne.s32.totalorder %s101, %s104
      %p110 = scmp.eq.s32.totalorder %s25, 0
      %p111 = por %p109, %p110
      %p112 = scmp.ne.s32.totalorder %s101, %s104
      %p113 = scmp.eq.s32.totalorder %s30, 1
      %p114 = por %p112, %p113
      %p115 = scmp.ne.s32.totalorder %s104, %s105
      %p116 = scmp.eq.s32.totalorder %s30, 0
      %p117 = por %p115, %p116
      %p118 = scmp.ne.s32.totalorder %s104, %s105
      %p119 = scmp.eq.s32.totalorder %s31, 1
      %p120 = por %p118, %p119
      %p122 = scmp.ne.s32.totalorder %s105, %s121
      %p123 = scmp.eq.s32.totalorder %s31, 0
      %p124 = por %p122, %p123
      %s126 = sadd.s32 %s125, 1
      %p129 = scmp.eq.s32.totalorder %s25, 1
      %p130 = scmp.ne.s32.totalorder %s125, %s127
      %p131 = scmp.eq.s32.totalorder %s25, 0
      %p132 = por %p130, %p131
      %p133 = scmp.ne.s32.totalorder %s125, %s127
      %p134 = scmp.eq.s32.totalorder %s30, 1
      %p135 = por %p133, %p134
      %p136 = scmp.ne.s32.totalorder %s127, %s128
      %p137 = scmp.eq.s32.totalorder %s30, 0
      %p138 = por %p136, %p137
      %p139 = scmp.ne.s32.totalorder %s127, %s128
      %p140 = scmp.eq.s32.totalorder %s31, 1
      %p141 = por %p139, %p140
      %p143 = scmp.ne.s32.totalorder %s128, %s142
      %p144 = scmp.eq.s32.totalorder %s31, 0
      %p145 = por %p143, %p144
      %s147 = sadd.s32 %s146, 1
      %p150 = scmp.eq.s32.totalorder %s25, 1
      %p151 = scmp.ne.s32.totalorder %s146, %s148
      %p152 = scmp.eq.s32.totalorder %s25, 0
      %p153 = por %p151, %p152
      %p154 = scmp.ne.s32.totalorder %s146, %s148
      %p155 = scmp.eq.s32.totalorder %s30, 1
      %p156 = por %p154, %p155
      %p157 = scmp.ne.s32.totalorder %s148, %s149
      %p158 = scmp.eq.s32.totalorder %s30, 0
      %p159 = por %p157, %p158
      %p160 = scmp.ne.s32.totalorder %s148, %s149
      %p161 = scmp.eq.s32.totalorder %s31, 1
      %p162 = por %p160, %p161
      %p164 = scmp.ne.s32.totalorder %s149, %s163
      %p165 = scmp.eq.s32.totalorder %s31, 0
      %p166 = por %p164, %p165
      %s168 = sadd.s32 %s167, 1
      %p171 = scmp.eq.s32.totalorder %s25, 1
      %p172 = scmp.ne.s32.totalorder %s167, %s169
      %p173 = scmp.eq.s32.totalorder %s25, 0
      %p174 = por %p172, %p173
      %p175 = scmp.ne.s32.totalorder %s167, %s169
      %p176 = scmp.eq.s32.totalorder %s30, 1
      %p177 = por %p175, %p176
      %p178 = scmp.ne.s32.totalorder %s169, %s170
      %p179 = scmp.eq.s32.totalorder %s30, 0
      %p180 = por %p178, %p179
      %p181 = scmp.ne.s32.totalorder %s169, %s170
      %p182 = scmp.eq.s32.totalorder %s31, 1
      %p183 = por %p181, %p182
      %p185 = scmp.ne.s32.totalorder %s170, %s184
      %p186 = scmp.eq.s32.totalorder %s31, 0
      %p187 = por %p185, %p186
      %s189 = sadd.s32 %s188, 1
      %p192 = scmp.eq.s32.totalorder %s25, 1
      %p193 = scmp.ne.s32.totalorder %s188, %s190
      %p194 = scmp.eq.s32.totalorder %s25, 0
      %p195 = por %p193, %p194
      %p196 = scmp.ne.s32.totalorder %s188, %s190
      %p197 = scmp.eq.s32.totalorder %s30, 1
      %p198 = por %p196, %p197
      %p199 = scmp.ne.s32.totalorder %s190, %s191
      %p200 = scmp.eq.s32.totalorder %s30, 0
      %p201 = por %p199, %p200
      %p202 = scmp.ne.s32.totalorder %s190, %s191
      %p203 = scmp.eq.s32.totalorder %s31, 1
      %p204 = por %p202, %p203
      %p206 = scmp.ne.s32.totalorder %s191, %s205
      %p207 = scmp.eq.s32.totalorder %s31, 0
      %p208 = por %p206, %p207
      %s210 = sadd.s32 %s209, 1
      %p213 = scmp.eq.s32.totalorder %s25, 1
      %p214 = scmp.ne.s32.totalorder %s209, %s211
      %p215 = scmp.eq.s32.totalorder %s25, 0
      %p216 = por %p214, %p215
      %p217 = scmp.ne.s32.totalorder %s209, %s211
      %p218 = scmp.eq.s32.totalorder %s30, 1
      %p219 = por %p217, %p218
      %p220 = scmp.ne.s32.totalorder %s211, %s212
      %p221 = scmp.eq.s32.totalorder %s30, 0
      %p222 = por %p220, %p221
      %p223 = scmp.ne.s32.totalorder %s211, %s212
      %p224 = scmp.eq.s32.totalorder %s31, 1
      %p225 = por %p223, %p224
      %p227 = scmp.ne.s32.totalorder %s212, %s226
      %p228 = scmp.eq.s32.totalorder %s31, 0
      %p229 = por %p227, %p228
      %s231 = sadd.s32 %s230, 1
      %p234 = scmp.eq.s32.totalorder %s25, 1
      %p235 = scmp.ne.s32.totalorder %s230, %s232
      %p236 = scmp.eq.s32.totalorder %s25, 0
      %p237 = por %p235, %p236
      %p238 = scmp.ne.s32.totalorder %s230, %s232
      %p239 = scmp.eq.s32.totalorder %s30, 1
      %p240 = por %p238, %p239
      %p241 = scmp.ne.s32.totalorder %s232, %s233
      %p242 = scmp.eq.s32.totalorder %s30, 0
      %p243 = por %p241, %p242
      %p244 = scmp.ne.s32.totalorder %s232, %s233
      %p245 = scmp.eq.s32.totalorder %s31, 1
      %p246 = por %p244, %p245
      %p248 = scmp.ne.s32.totalorder %s233, %s247
      %p249 = scmp.eq.s32.totalorder %s31, 0
      %p250 = por %p248, %p249
      %s251 = ssub.s32 %s32, %s44
      %s252 = ssub.s32 %s33, %s40
      %s253 = sor.u32 %s251, %s252
      %p254 = scmp.eq.s32.totalorder %s253, 0
      %s256 = sadd.s32 %s255, 1
      %s257 = scalar_select %p254, %s255, %s256
      %p260 = pneg %p254
      %p261 = scmp.eq.s32.totalorder %s25, 1
      %p262 = por %p260, %p261
      %p263 = scmp.ne.s32.totalorder %s255, %s258
      %p264 = scmp.eq.s32.totalorder %s25, 0
      %p265 = por %p263, %p264
      %p266 = scmp.ne.s32.totalorder %s255, %s258
      %p267 = scmp.eq.s32.totalorder %s30, 1
      %p268 = por %p266, %p267
      %p269 = scmp.ne.s32.totalorder %s258, %s259
      %p270 = scmp.eq.s32.totalorder %s30, 0
      %p271 = por %p269, %p270
      %p272 = scmp.ne.s32.totalorder %s258, %s259
      %p273 = scmp.eq.s32.totalorder %s31, 1
      %p274 = por %p272, %p273
      %p276 = scmp.ne.s32.totalorder %s259, %s275
      %p277 = scmp.eq.s32.totalorder %s31, 0
      %p278 = por %p276, %p277
      %p279 = scmp.le.s32.totalorder 1, %s25
      %p280 = scmp.lt.s32.totalorder %s25, 3
      %p281 = pnand %p279, %p280
      %p282 = pneg %p281
      // Predicated region
      $region9: #{tpu_custom_call.1} parent=5 // pred_check
        _
      $region10: #{tpu_custom_call.1} parent=5 // pred_check_branch
        %284 = sbr.rel (%p281) target = $region12
      $region11: #{tpu_custom_call.1} parent=5 // pred_region
        %s285 = ssub.s32 %s25, 1
        // Predicated region
        $region13: #{tpu_custom_call.1} parent=11 // pred_check
          %p286 = pneg %p138
        $region14: #{tpu_custom_call.1} parent=11 // pred_check_branch
          %288 = sbr.rel (%p286) target = $region16
        $region15: #{tpu_custom_call.1} parent=11 // pred_region
          %s290 = ssub.s32 256, 256
          %291 = vsyncadd [#allocation7], %s290
          %s292 = sshll.u32 [#allocation8], 4
          %s293 = int_to_ptr.vmem [resolvable:$true] %s292
          %298 = dma.hbm_to_vmem [thread:$0]  %s3, 256, %s293, [#allocation7], 64, 64, 4
        $region16: #{tpu_custom_call.1} parent=11 // pred_fallthru
          _
        // Predicated region
        $region17: #{tpu_custom_call.1} parent=11 // pred_check
          %p299 = pneg %p159
        $region18: #{tpu_custom_call.1} parent=11 // pred_check_branch
          %301 = sbr.rel (%p299) target = $region20
        $region19: #{tpu_custom_call.1} parent=11 // pred_region
          _
        $region20: #{tpu_custom_call.1} parent=11 // pred_fallthru
          _
        // Predicated region
        $region21: #{tpu_custom_call.1} parent=11 // pred_check
          %p302 = pneg %p180
        $region22: #{tpu_custom_call.1} parent=11 // pred_check_branch
          %304 = sbr.rel (%p302) target = $region24
        $region23: #{tpu_custom_call.1} parent=11 // pred_region
          %s306 = ssub.s32 256, 256
          %307 = vsyncadd [#allocation10], %s306
          %s308 = sshll.u32 [#allocation9], 4
          %s309 = int_to_ptr.vmem [resolvable:$true] %s308
          %314 = dma.hbm_to_vmem [thread:$0]  %s5, 256, %s309, [#allocation10], 64, 64, 4
        $region24: #{tpu_custom_call.1} parent=11 // pred_fallthru
          _
        // Predicated region
        $region25: #{tpu_custom_call.1} parent=11 // pred_check
          %p315 = pneg %p201
        $region26: #{tpu_custom_call.1} parent=11 // pred_check_branch
          %317 = sbr.rel (%p315) target = $region28
        $region27: #{tpu_custom_call.1} parent=11 // pred_region
          _
        $region28: #{tpu_custom_call.1} parent=11 // pred_fallthru
          _
        // Predicated region
        $region29: #{tpu_custom_call.1} parent=11 // pred_check
          %p318 = pneg %p222
        $region30: #{tpu_custom_call.1} parent=11 // pred_check_branch
          %320 = sbr.rel (%p318) target = $region32
        $region31: #{tpu_custom_call.1} parent=11 // pred_region
          %s322 = ssub.s32 256, 256
          %323 = vsyncadd [#allocation10], %s322
          %s324 = sshll.u32 [#allocation11], 4
          %s325 = int_to_ptr.vmem [resolvable:$true] %s324
          %330 = dma.hbm_to_vmem [thread:$0]  %s7, 256, %s325, [#allocation10], 64, 64, 4
        $region32: #{tpu_custom_call.1} parent=11 // pred_fallthru
          _
        // Predicated region
        $region33: #{tpu_custom_call.1} parent=11 // pred_check
          %p331 = pneg %p243
        $region34: #{tpu_custom_call.1} parent=11 // pred_check_branch
          %333 = sbr.rel (%p331) target = $region36
        $region35: #{tpu_custom_call.1} parent=11 // pred_region
          _
        $region36: #{tpu_custom_call.1} parent=11 // pred_fallthru
          _
      $region12: #{tpu_custom_call.1} parent=5 // pred_fallthru
        _
      %p334 = scmp.lt.s32.totalorder %s25, 2
      // Predicated region
      $region37: #{tpu_custom_call.1} parent=5 // pred_check
        %p335 = pneg %p334
      $region38: #{tpu_custom_call.1} parent=5 // pred_check_branch
        %337 = sbr.rel (%p335) target = $region40
      $region39: #{tpu_custom_call.1} parent=5 // pred_region
        // Predicated region
        $region41: #{tpu_custom_call.1} parent=39 // pred_check
          %p338 = pneg %p59
        $region42: #{tpu_custom_call.1} parent=39 // pred_check_branch
          %340 = sbr.rel (%p338) target = $region44
        $region43: #{tpu_custom_call.1} parent=39 // pred_region
          %s341 = sand.u32 %s49, 1
          %s342 = scalar_lea.sflag [#allocation4], %s341
          %s343 = sand.u32 %s49, 1
          %s344 = smul.addr %s343, 4
          %s345 = scalar_lea.vmem [#allocation3], %s344
          %s347 = ssub.s32 64, 64
          %348 = vsyncadd %s342, %s347
          %s349 = sadd.s32 %s33, %s32
          %s350 = smul.addr %s349, 64
          %s351 = scalar_lea.hbm %s0, %s350
          %s353 = sshll.u32 %s345, 4
          %s354 = int_to_ptr.vmem [resolvable:$true] %s353
          %356 = dma.hbm_to_vmem [thread:$0]  %s351, 64, %s354, %s342
        $region44: #{tpu_custom_call.1} parent=39 // pred_fallthru
          _
        // Predicated region
        $region45: #{tpu_custom_call.1} parent=39 // pred_check
          %p357 = pneg %p85
        $region46: #{tpu_custom_call.1} parent=39 // pred_check_branch
          %359 = sbr.rel (%p357) target = $region48
        $region47: #{tpu_custom_call.1} parent=39 // pred_region
          %s360 = sand.u32 %s25, 1
          %s361 = scalar_lea.sflag [#allocation7], %s360
          %s362 = sand.u32 %s75, 1
          %s363 = smul.addr %s362, 4
          %s364 = scalar_lea.vmem [#allocation6], %s363
          %s366 = ssub.s32 64, 64
          %367 = vsyncadd %s361, %s366
          %s368 = smul.addr %s32, 64
          %s369 = scalar_lea.hbm %s1, %s368
          %s371 = sshll.u32 %s364, 4
          %s372 = int_to_ptr.vmem [resolvable:$true] %s371
          %374 = dma.hbm_to_vmem [thread:$0]  %s369, 64, %s372, %s361
        $region48: #{tpu_custom_call.1} parent=39 // pred_fallthru
          _
        // Predicated region
        $region49: #{tpu_custom_call.1} parent=39 // pred_check
          %p375 = pneg %p111
        $region50: #{tpu_custom_call.1} parent=39 // pred_check_branch
          %377 = sbr.rel (%p375) target = $region52
        $region51: #{tpu_custom_call.1} parent=39 // pred_region
          %p378 = scmp.lt.s32.totalorder %s32, 1
          %s379 = scalar_select %p378, %s32, 1
          %s380 = scalar_lea.vmem %s2, %s379
        $region52: #{tpu_custom_call.1} parent=39 // pred_fallthru
          _
      $region40: #{tpu_custom_call.1} parent=5 // pred_fallthru
        _
      %p381 = scmp.le.s32.totalorder 1, %s25
      %p382 = scmp.lt.s32.totalorder %s25, 3
      %p383 = pnand %p381, %p382
      %p384 = pneg %p383
      // Predicated region
      $region53: #{tpu_custom_call.1} parent=5 // pred_check
        _
      $region54: #{tpu_custom_call.1} parent=5 // pred_check_branch
        %386 = sbr.rel (%p383) target = $region56
      $region55: #{tpu_custom_call.1} parent=5 // pred_region
        %s387 = ssub.s32 %s25, 1
        %s388 = sand.u32 %s52, 1
        %s389 = scalar_lea.sflag [#allocation4], %s388
        %s390 = sand.u32 %s52, 1
        %s391 = smul.addr %s390, 4
        %s392 = scalar_lea.vmem [#allocation3], %s391
        // Predicated region
        $region57: #{tpu_custom_call.1} parent=55 // pred_check
          %p393 = pneg %p65
        $region58: #{tpu_custom_call.1} parent=55 // pred_check_branch
          %395 = sbr.rel (%p393) target = $region60
        $region59: #{tpu_custom_call.1} parent=55 // pred_region
          %396 = dma.done %s389, 64
        $region60: #{tpu_custom_call.1} parent=55 // pred_fallthru
          _
        %s397 = sand.u32 %s30, 1
        %s398 = scalar_lea.sflag [#allocation7], %s397
        %s399 = sand.u32 %s78, 1
        %s400 = smul.addr %s399, 4
        %s401 = scalar_lea.vmem [#allocation6], %s400
        // Predicated region
        $region61: #{tpu_custom_call.1} parent=55 // pred_check
          %p402 = pneg %p91
        $region62: #{tpu_custom_call.1} parent=55 // pred_check_branch
          %404 = sbr.rel (%p402) target = $region64
        $region63: #{tpu_custom_call.1} parent=55 // pred_region
          %405 = dma.done %s398, 64
        $region64: #{tpu_custom_call.1} parent=55 // pred_fallthru
          _
        // Predicated region
        $region65: #{tpu_custom_call.1} parent=55 // pred_check
          %p406 = pneg %p138
        $region66: #{tpu_custom_call.1} parent=55 // pred_check_branch
          %408 = sbr.rel (%p406) target = $region68
        $region67: #{tpu_custom_call.1} parent=55 // pred_region
          %409 = dma.done [#allocation7], 256
        $region68: #{tpu_custom_call.1} parent=55 // pred_fallthru
          _
        // Predicated region
        $region69: #{tpu_custom_call.1} parent=55 // pred_check
          %p410 = pneg %p180
        $region70: #{tpu_custom_call.1} parent=55 // pred_check_branch
          %412 = sbr.rel (%p410) target = $region72
        $region71: #{tpu_custom_call.1} parent=55 // pred_region
          %413 = dma.done [#allocation10], 256
        $region72: #{tpu_custom_call.1} parent=55 // pred_fallthru
          _
        // Predicated region
        $region73: #{tpu_custom_call.1} parent=55 // pred_check
          %p414 = pneg %p222
        $region74: #{tpu_custom_call.1} parent=55 // pred_check_branch
          %416 = sbr.rel (%p414) target = $region76
        $region75: #{tpu_custom_call.1} parent=55 // pred_region
          %417 = dma.done [#allocation10], 256
        $region76: #{tpu_custom_call.1} parent=55 // pred_fallthru
          _
        %s418 = sand.u32 %s52, 1
        %s419 = scalar_lea.sflag [#allocation4], %s418
        %s420 = sand.u32 %s52, 1
        %s421 = smul.addr %s420, 4
        %s422 = scalar_lea.vmem [#allocation3], %s421
        %p423 = pneg %p65
        %p424 = pneg %p62
        %s425 = sand.u32 %s30, 1
        %s426 = scalar_lea.sflag [#allocation7], %s425
        %s427 = sand.u32 %s78, 1
        %s428 = smul.addr %s427, 4
        %s429 = scalar_lea.vmem [#allocation6], %s428
        %p430 = pneg %p91
        %p431 = pneg %p88
        %p432 = scmp.lt.s32.totalorder %s34, 1
        %s433 = scalar_select %p432, %s34, 1
        %s434 = scalar_lea.vmem %s2, %s433
        %p435 = pneg %p117
        %p436 = pneg %p114
        %p437 = pneg %p138
        %p438 = pneg %p135
        %p439 = pneg %p159
        %p440 = pneg %p156
        %p441 = pneg %p180
        %p442 = pneg %p177
        %p443 = pneg %p201
        %p444 = pneg %p198
        %p445 = pneg %p222
        %p446 = pneg %p219
        %p447 = pneg %p243
        %p448 = pneg %p240
        %p449 = pneg %p271
        %p450 = pneg %p268
        %s451 = sand.u32 %s258, 1
        %s452 = scalar_lea.sflag [#allocation5], %s451
        %s453 = sand.u32 %s258, 1
        %s454 = smul.addr %s453, 8
        %s455 = scalar_lea.vmem [#allocation12], %s454
        %p456 = scmp.lt.s32.totalorder %s34, 1
        %s457 = scalar_select %p456, %s34, 1
        %s458 = scalar_lea.vmem %s2, %s457
        %p460 = scmp.eq.s32.totalorder %s35, 0
        // Predicated region
        $region77: #{tpu_custom_call.1} parent=55 // pred_check
          %p461 = pneg %p460
        $region78: #{tpu_custom_call.1} parent=55 // pred_check_branch
          %463 = sbr.rel (%p461) target = $region80
        $region79: #{tpu_custom_call.1} parent=55 // pred_region
          %v464 = vld [vmem:[%s401] sm:$0xf]
          %v465 = vld [vmem:[#allocation9] sm:$0xf]
          %v466 = vld [vmem:[#allocation9 + $0x4] sm:$0xf]
          %v467 = vld [vmem:[#allocation9 + $0x8] sm:$0xf]
          %v468 = vld [vmem:[#allocation9 + $0xc] sm:$0xf]
          %v469 = vld [vmem:[%s6] sm:$0x1]
          %v471 = vlaneseq
          %v472 = vshrl.u32 %v471, 7
          %v473 = vsub.s32 0, %v472
          %v474 = vrot.slane %v469, %v473
          %v480 = vunpack.c.l.b16 %v465
          %v481 = vunpack.c.l.b16 %v466
          %v482 = vunpack.c.l.b16 %v467
          %v483 = vunpack.c.l.b16 %v468
          %v484 = vpack.c.b16 %v481, %v480
          %v485 = vpack.c.b16 %v483, %v482
          %vm488 = vcmask 261120
          %v490 = vsel %vm488, %v464, 0
          %492 = vmatprep.subr.bf16.mxu0 0
          %493 = vmatpush1.bf16.msra.mxu0 0
          %494 = vmatprep.subr.bf16.mxu0 0
          %495 = vmatpush1.bf16.msra.mxu0 0
          %496 = vmatprep.subr.bf16.mxu0 0
          %497 = vmatpush1.bf16.msra.mxu0 0
          %498 = vmatprep.subr.bf16.mxu0 0
          %499 = vmatpush1.bf16.msra.mxu0 0
          %500 = vmatprep.subr.bf16.mxu0 0
          %501 = vmatpush1.bf16.msra.mxu0 0
          %502 = vmatprep.subr.bf16.mxu0 0
          %503 = vmatpush1.bf16.msra.mxu0 0
          %504 = vmatprep.subr.bf16.mxu0 0
          %505 = vmatpush1.bf16.msra.mxu0 %v485
          %506 = vmatprep.subr.bf16.mxu0 0
          %507 = vmatpush1.bf16.msra.mxu0 %v484
          %508 = vmatprep.subr.bf16.mxu0 0
          %509 = vmatpush2.bf16.msra.mxu0 0
          %510 = vmatprep.subr.bf16.mxu0 0
          %511 = vmatpush2.bf16.msra.mxu0 0
          %512 = vmatprep.subr.bf16.mxu0 0
          %513 = vmatpush2.bf16.msra.mxu0 0
          %514 = vmatprep.subr.bf16.mxu0 0
          %515 = vmatpush2.bf16.msra.mxu0 0
          %516 = vmatprep.subr.bf16.mxu0 0
          %517 = vmatpush2.bf16.msra.mxu0 0
          %518 = vmatprep.subr.bf16.mxu0 0
          %519 = vmatpush2.bf16.msra.mxu0 0
          %520 = vmatprep.subr.bf16.mxu0 0
          %521 = vmatpush2.bf16.msra.mxu0 0
          %522 = vmatprep.subr.bf16.mxu0 0
          %523 = vmatpush2.bf16.msra.mxu0 0
          %524 = vmatprep.mubr.bf16.mxu0 0
          %525 = vmatmul.mubr.bf16.gmra.mxu0 %v490
          %v526 = vpop.f32.mrf.mxu0
          %v527 = vadd.f32 %v474, %v526
          %v528 = vpop.f32.mrf.mxu0
          %v529 = vpop.f32.mrf.mxu0
          %v530 = vpop.f32.mrf.mxu0
          %531 = vdwg.mxu0
          %v532 = vpack.c.bf16 %v527, %v527
          %vm533 = vcmask 519168
          %534 = vst.msk [vmem:[#allocation2] sm:$0xf] %vm533, %v532
        $region80: #{tpu_custom_call.1} parent=55 // pred_fallthru
          _
        %v535 = vld [vmem:[%s392] sm:$0xf]
        %v536 = vld [vmem:[%s458] sm:$0x1]
        %v537 = vld [vmem:[#allocation8] sm:$0xf]
        %v538 = vld [vmem:[#allocation8 + $0x4] sm:$0xf]
        %v539 = vld [vmem:[#allocation8 + $0x8] sm:$0xf]
        %v540 = vld [vmem:[#allocation8 + $0xc] sm:$0xf]
        %v541 = vld [vmem:[%s4] sm:$0x1]
        %v543 = vlaneseq
        %v544 = vshrl.u32 %v543, 7
        %v545 = vsub.s32 0, %v544
        %v546 = vrot.slane %v541, %v545
        %v552 = vunpack.c.l.b16 %v537
        %v553 = vunpack.c.l.b16 %v538
        %v554 = vunpack.c.l.b16 %v539
        %v555 = vunpack.c.l.b16 %v540
        %v556 = vpack.c.b16 %v553, %v552
        %v557 = vpack.c.b16 %v555, %v554
        %vm560 = vcmask 261120
        %v562 = vsel %vm560, %v535, 0
        %564 = vmatprep.subr.bf16.mxu0 0
        %565 = vmatpush1.bf16.msra.mxu0 0
        %566 = vmatprep.subr.bf16.mxu0 0
        %567 = vmatpush1.bf16.msra.mxu0 0
        %568 = vmatprep.subr.bf16.mxu0 0
        %569 = vmatpush1.bf16.msra.mxu0 0
        %570 = vmatprep.subr.bf16.mxu0 0
        %571 = vmatpush1.bf16.msra.mxu0 0
        %572 = vmatprep.subr.bf16.mxu0 0
        %573 = vmatpush1.bf16.msra.mxu0 0
        %574 = vmatprep.subr.bf16.mxu0 0
        %575 = vmatpush1.bf16.msra.mxu0 0
        %576 = vmatprep.subr.bf16.mxu0 0
        %577 = vmatpush1.bf16.msra.mxu0 %v557
        %578 = vmatprep.subr.bf16.mxu0 0
        %579 = vmatpush1.bf16.msra.mxu0 %v556
        %580 = vmatprep.subr.bf16.mxu0 0
        %581 = vmatpush2.bf16.msra.mxu0 0
        %582 = vmatprep.subr.bf16.mxu0 0
        %583 = vmatpush2.bf16.msra.mxu0 0
        %584 = vmatprep.subr.bf16.mxu0 0
        %585 = vmatpush2.bf16.msra.mxu0 0
        %586 = vmatprep.subr.bf16.mxu0 0
        %587 = vmatpush2.bf16.msra.mxu0 0
        %588 = vmatprep.subr.bf16.mxu0 0
        %589 = vmatpush2.bf16.msra.mxu0 0
        %590 = vmatprep.subr.bf16.mxu0 0
        %591 = vmatpush2.bf16.msra.mxu0 0
        %592 = vmatprep.subr.bf16.mxu0 0
        %593 = vmatpush2.bf16.msra.mxu0 0
        %594 = vmatprep.subr.bf16.mxu0 0
        %595 = vmatpush2.bf16.msra.mxu0 0
        %596 = vmatprep.mubr.bf16.mxu0 0
        %597 = vmatmul.mubr.bf16.gmra.mxu0 %v562
        %v598 = vpop.f32.mrf.mxu0
        %v599 = vadd.f32 %v546, %v598
        %v600 = vpop.f32.mrf.mxu0
        %v601 = vpop.f32.mrf.mxu0
        %v602 = vpop.f32.mrf.mxu0
        %603 = vdwg.mxu0
        %v604 = vpack.c.bf16 %v599, %v599
        %v605 = vld [vmem:[#allocation2] sm:$0xf]
        %v607 = vlaneseq
        %v608 = vshrl.u32 %v607, 7
        %v609 = vsub.s32 0, %v608
        %v610 = vrot.slane %v536, %v609
        %vm612 = vcmask 64512
        %v614 = vsel %vm612, %v604, 0
        %v617 = vsel %vm612, %v605, 0
        %619 = vmatprep.subr.bf16.mxu0 0
        %620 = vmatpush1.bf16.xpose.msra.mxu0 0
        %621 = vmatprep.subr.bf16.mxu0 0
        %622 = vmatpush1.bf16.xpose.msra.mxu0 0
        %623 = vmatprep.subr.bf16.mxu0 0
        %624 = vmatpush1.bf16.xpose.msra.mxu0 0
        %625 = vmatprep.subr.bf16.mxu0 0
        %626 = vmatpush1.bf16.xpose.msra.mxu0 0
        %627 = vmatprep.subr.bf16.mxu0 0
        %628 = vmatpush1.bf16.xpose.msra.mxu0 0
        %629 = vmatprep.subr.bf16.mxu0 0
        %630 = vmatpush1.bf16.xpose.msra.mxu0 0
        %631 = vmatprep.subr.bf16.mxu0 0
        %632 = vmatpush1.bf16.xpose.msra.mxu0 0
        %633 = vmatprep.subr.bf16.mxu0 0
        %634 = vmatpush1.bf16.xpose.msra.mxu0 %v617
        %635 = vmatprep.subr.bf16.mxu0 0
        %636 = vmatpush2.bf16.xpose.msra.mxu0 0
        %637 = vmatprep.subr.bf16.mxu0 0
        %638 = vmatpush2.bf16.xpose.msra.mxu0 0
        %639 = vmatprep.subr.bf16.mxu0 0
        %640 = vmatpush2.bf16.xpose.msra.mxu0 0
        %641 = vmatprep.subr.bf16.mxu0 0
        %642 = vmatpush2.bf16.xpose.msra.mxu0 0
        %643 = vmatprep.subr.bf16.mxu0 0
        %644 = vmatpush2.bf16.xpose.msra.mxu0 0
        %645 = vmatprep.subr.bf16.mxu0 0
        %646 = vmatpush2.bf16.xpose.msra.mxu0 0
        %647 = vmatprep.subr.bf16.mxu0 0
        %648 = vmatpush2.bf16.xpose.msra.mxu0 0
        %649 = vmatprep.subr.bf16.mxu0 0
        %650 = vmatpush2.bf16.xpose.msra.mxu0 0
        %651 = vmatprep.mubr.bf16.mxu0 0
        %652 = vmatmul.mubr.bf16.gmra.mxu0 %v614
        %v653 = vpop.f32.mrf.mxu0
        %v654 = vadd.f32 %v610, %v653
        %v655 = vpop.f32.mrf.mxu0
        %v656 = vpop.f32.mrf.mxu0
        %v657 = vpop.f32.mrf.mxu0
        %658 = vdwg.mxu0
        %v659 = vsel %vm612, %v654, -inf
        %660 = vmax.xlane.f32.xlu0 %v659
        %v661 = vpop.xlane.xlu0 %660
        %v662 = vsub.f32 %v654, %v661
        %v663 = vmul.f32 %v662, 1.442695
        %v664 = vpow.pop %v663
        %v665 = vsel %vm612, %v664, 0.0
        %666 = vadd.xlane.f32.xlu0 %v665
        %v667 = vpop.xlane.xlu0 %666
        %v668 = vrcp.pop %v667
        %v669 = vmul.f32 %v664, %v668
        %v670 = vpack.c.bf16 %v669, %v669
        %v672 = vunpack.c.l.b16 %v605
        %v673 = vpack.c.b16 %v672, %v672
        %674 = vrot.lane.b32.xlu0 %v673, 96
        %v675 = vpop.permute.xlu0 %674
        %v677 = vsel %vm612, %v670, 0
        %vm679 = vcmask 1043456
        %v681 = vsel %vm679, %v675, 0
        %683 = vmatprep.subr.bf16.mxu0 0
        %684 = vmatpush1.bf16.msra.mxu0 0
        %685 = vmatprep.subr.bf16.mxu0 0
        %686 = vmatpush1.bf16.msra.mxu0 0
        %687 = vmatprep.subr.bf16.mxu0 0
        %688 = vmatpush1.bf16.msra.mxu0 0
        %689 = vmatprep.subr.bf16.mxu0 0
        %690 = vmatpush1.bf16.msra.mxu0 0
        %691 = vmatprep.subr.bf16.mxu0 0
        %692 = vmatpush1.bf16.msra.mxu0 0
        %693 = vmatprep.subr.bf16.mxu0 0
        %694 = vmatpush1.bf16.msra.mxu0 0
        %695 = vmatprep.subr.bf16.mxu0 0
        %696 = vmatpush1.bf16.msra.mxu0 0
        %697 = vmatprep.subr.bf16.mxu0 0
        %698 = vmatpush1.bf16.msra.mxu0 %v681
        %699 = vmatprep.subr.bf16.mxu0 0
        %700 = vmatpush2.bf16.msra.mxu0 0
        %701 = vmatprep.subr.bf16.mxu0 0
        %702 = vmatpush2.bf16.msra.mxu0 0
        %703 = vmatprep.subr.bf16.mxu0 0
        %704 = vmatpush2.bf16.msra.mxu0 0
        %705 = vmatprep.subr.bf16.mxu0 0
        %706 = vmatpush2.bf16.msra.mxu0 0
        %707 = vmatprep.subr.bf16.mxu0 0
        %708 = vmatpush2.bf16.msra.mxu0 0
        %709 = vmatprep.subr.bf16.mxu0 0
        %710 = vmatpush2.bf16.msra.mxu0 0
        %711 = vmatprep.subr.bf16.mxu0 0
        %712 = vmatpush2.bf16.msra.mxu0 0
        %713 = vmatprep.subr.bf16.mxu0 0
        %714 = vmatpush2.bf16.msra.mxu0 0
        %715 = vmatprep.mubr.bf16.mxu0 0
        %716 = vmatmul.mubr.bf16.gmra.mxu0 %v677
        %v717 = vpop.f32.mrf.mxu0
        %v718 = vadd.f32 0.0, %v717
        %v719 = vpop.f32.mrf.mxu0
        %v720 = vpop.f32.mrf.mxu0
        %v721 = vpop.f32.mrf.mxu0
        %722 = vdwg.mxu0
        %724 = vrot.lane.b32.xlu0 %v604, 120
        %v725 = vpop.permute.xlu0 %724
        %726 = vrot.lane.b32.xlu0 %v673, 120
        %v727 = vpop.permute.xlu0 %726
        %v729 = vsel %vm612, %v725, 0
        %v732 = vsel %vm612, %v727, 0
        %734 = vmatprep.subr.bf16.mxu0 0
        %735 = vmatpush1.bf16.xpose.msra.mxu0 0
        %736 = vmatprep.subr.bf16.mxu0 0
        %737 = vmatpush1.bf16.xpose.msra.mxu0 0
        %738 = vmatprep.subr.bf16.mxu0 0
        %739 = vmatpush1.bf16.xpose.msra.mxu0 0
        %740 = vmatprep.subr.bf16.mxu0 0
        %741 = vmatpush1.bf16.xpose.msra.mxu0 0
        %742 = vmatprep.subr.bf16.mxu0 0
        %743 = vmatpush1.bf16.xpose.msra.mxu0 0
        %744 = vmatprep.subr.bf16.mxu0 0
        %745 = vmatpush1.bf16.xpose.msra.mxu0 0
        %746 = vmatprep.subr.bf16.mxu0 0
        %747 = vmatpush1.bf16.xpose.msra.mxu0 0
        %748 = vmatprep.subr.bf16.mxu0 0
        %749 = vmatpush1.bf16.xpose.msra.mxu0 %v732
        %750 = vmatprep.subr.bf16.mxu0 0
        %751 = vmatpush2.bf16.xpose.msra.mxu0 0
        %752 = vmatprep.subr.bf16.mxu0 0
        %753 = vmatpush2.bf16.xpose.msra.mxu0 0
        %754 = vmatprep.subr.bf16.mxu0 0
        %755 = vmatpush2.bf16.xpose.msra.mxu0 0
        %756 = vmatprep.subr.bf16.mxu0 0
        %757 = vmatpush2.bf16.xpose.msra.mxu0 0
        %758 = vmatprep.subr.bf16.mxu0 0
        %759 = vmatpush2.bf16.xpose.msra.mxu0 0
        %760 = vmatprep.subr.bf16.mxu0 0
        %761 = vmatpush2.bf16.xpose.msra.mxu0 0
        %762 = vmatprep.subr.bf16.mxu0 0
        %763 = vmatpush2.bf16.xpose.msra.mxu0 0
        %764 = vmatprep.subr.bf16.mxu0 0
        %765 = vmatpush2.bf16.xpose.msra.mxu0 0
        %766 = vmatprep.mubr.bf16.mxu0 0
        %767 = vmatmul.mubr.bf16.gmra.mxu0 %v729
        %v768 = vpop.f32.mrf.mxu0
        %v769 = vadd.f32 %v610, %v768
        %v770 = vpop.f32.mrf.mxu0
        %v771 = vpop.f32.mrf.mxu0
        %v772 = vpop.f32.mrf.mxu0
        %773 = vdwg.mxu0
        %v774 = vsel %vm612, %v769, -inf
        %775 = vmax.xlane.f32.xlu0 %v774
        %v776 = vpop.xlane.xlu0 %775
        %v777 = vsub.f32 %v769, %v776
        %v778 = vmul.f32 %v777, 1.442695
        %v779 = vpow.pop %v778
        %v780 = vsel %vm612, %v779, 0.0
        %781 = vadd.xlane.f32.xlu0 %v780
        %v782 = vpop.xlane.xlu0 %781
        %v783 = vrcp.pop %v782
        %v784 = vmul.f32 %v779, %v783
        %v785 = vpack.c.bf16 %v784, %v784
        %786 = vrot.lane.b32.xlu0 %v673, 88
        %v787 = vpop.permute.xlu0 %786
        %v789 = vsel %vm612, %v785, 0
        %v792 = vsel %vm679, %v787, 0
        %794 = vmatprep.subr.bf16.mxu0 0
        %795 = vmatpush1.bf16.msra.mxu0 0
        %796 = vmatprep.subr.bf16.mxu0 0
        %797 = vmatpush1.bf16.msra.mxu0 0
        %798 = vmatprep.subr.bf16.mxu0 0
        %799 = vmatpush1.bf16.msra.mxu0 0
        %800 = vmatprep.subr.bf16.mxu0 0
        %801 = vmatpush1.bf16.msra.mxu0 0
        %802 = vmatprep.subr.bf16.mxu0 0
        %803 = vmatpush1.bf16.msra.mxu0 0
        %804 = vmatprep.subr.bf16.mxu0 0
        %805 = vmatpush1.bf16.msra.mxu0 0
        %806 = vmatprep.subr.bf16.mxu0 0
        %807 = vmatpush1.bf16.msra.mxu0 0
        %808 = vmatprep.subr.bf16.mxu0 0
        %809 = vmatpush1.bf16.msra.mxu0 %v792
        %810 = vmatprep.subr.bf16.mxu0 0
        %811 = vmatpush2.bf16.msra.mxu0 0
        %812 = vmatprep.subr.bf16.mxu0 0
        %813 = vmatpush2.bf16.msra.mxu0 0
        %814 = vmatprep.subr.bf16.mxu0 0
        %815 = vmatpush2.bf16.msra.mxu0 0
        %816 = vmatprep.subr.bf16.mxu0 0
        %817 = vmatpush2.bf16.msra.mxu0 0
        %818 = vmatprep.subr.bf16.mxu0 0
        %819 = vmatpush2.bf16.msra.mxu0 0
        %820 = vmatprep.subr.bf16.mxu0 0
        %821 = vmatpush2.bf16.msra.mxu0 0
        %822 = vmatprep.subr.bf16.mxu0 0
        %823 = vmatpush2.bf16.msra.mxu0 0
        %824 = vmatprep.subr.bf16.mxu0 0
        %825 = vmatpush2.bf16.msra.mxu0 0
        %826 = vmatprep.mubr.bf16.mxu0 0
        %827 = vmatmul.mubr.bf16.gmra.mxu0 %v789
        %v828 = vpop.f32.mrf.mxu0
        %v829 = vadd.f32 0.0, %v828
        %v830 = vpop.f32.mrf.mxu0
        %v831 = vpop.f32.mrf.mxu0
        %v832 = vpop.f32.mrf.mxu0
        %833 = vdwg.mxu0
        %834 = vrot.lane.b32.xlu0 %v604, 112
        %v835 = vpop.permute.xlu0 %834
        %836 = vrot.lane.b32.xlu0 %v673, 112
        %v837 = vpop.permute.xlu0 %836
        %v839 = vsel %vm612, %v835, 0
        %v842 = vsel %vm612, %v837, 0
        %844 = vmatprep.subr.bf16.mxu0 0
        %845 = vmatpush1.bf16.xpose.msra.mxu0 0
        %846 = vmatprep.subr.bf16.mxu0 0
        %847 = vmatpush1.bf16.xpose.msra.mxu0 0
        %848 = vmatprep.subr.bf16.mxu0 0
        %849 = vmatpush1.bf16.xpose.msra.mxu0 0
        %850 = vmatprep.subr.bf16.mxu0 0
        %851 = vmatpush1.bf16.xpose.msra.mxu0 0
        %852 = vmatprep.subr.bf16.mxu0 0
        %853 = vmatpush1.bf16.xpose.msra.mxu0 0
        %854 = vmatprep.subr.bf16.mxu0 0
        %855 = vmatpush1.bf16.xpose.msra.mxu0 0
        %856 = vmatprep.subr.bf16.mxu0 0
        %857 = vmatpush1.bf16.xpose.msra.mxu0 0
        %858 = vmatprep.subr.bf16.mxu0 0
        %859 = vmatpush1.bf16.xpose.msra.mxu0 %v842
        %860 = vmatprep.subr.bf16.mxu0 0
        %861 = vmatpush2.bf16.xpose.msra.mxu0 0
        %862 = vmatprep.subr.bf16.mxu0 0
        %863 = vmatpush2.bf16.xpose.msra.mxu0 0
        %864 = vmatprep.subr.bf16.mxu0 0
        %865 = vmatpush2.bf16.xpose.msra.mxu0 0
        %866 = vmatprep.subr.bf16.mxu0 0
        %867 = vmatpush2.bf16.xpose.msra.mxu0 0
        %868 = vmatprep.subr.bf16.mxu0 0
        %869 = vmatpush2.bf16.xpose.msra.mxu0 0
        %870 = vmatprep.subr.bf16.mxu0 0
        %871 = vmatpush2.bf16.xpose.msra.mxu0 0
        %872 = vmatprep.subr.bf16.mxu0 0
        %873 = vmatpush2.bf16.xpose.msra.mxu0 0
        %874 = vmatprep.subr.bf16.mxu0 0
        %875 = vmatpush2.bf16.xpose.msra.mxu0 0
        %876 = vmatprep.mubr.bf16.mxu0 0
        %877 = vmatmul.mubr.bf16.gmra.mxu0 %v839
        %v878 = vpop.f32.mrf.mxu0
        %v879 = vadd.f32 %v610, %v878
        %v880 = vpop.f32.mrf.mxu0
        %v881 = vpop.f32.mrf.mxu0
        %v882 = vpop.f32.mrf.mxu0
        %883 = vdwg.mxu0
        %v884 = vsel %vm612, %v879, -inf
        %885 = vmax.xlane.f32.xlu0 %v884
        %v886 = vpop.xlane.xlu0 %885
        %v887 = vsub.f32 %v879, %v886
        %v888 = vmul.f32 %v887, 1.442695
        %v889 = vpow.pop %v888
        %v890 = vsel %vm612, %v889, 0.0
        %891 = vadd.xlane.f32.xlu0 %v890
        %v892 = vpop.xlane.xlu0 %891
        %v893 = vrcp.pop %v892
        %v894 = vmul.f32 %v889, %v893
        %v895 = vpack.c.bf16 %v894, %v894
        %896 = vrot.lane.b32.xlu0 %v673, 80
        %v897 = vpop.permute.xlu0 %896
        %v899 = vsel %vm612, %v895, 0
        %v902 = vsel %vm679, %v897, 0
        %904 = vmatprep.subr.bf16.mxu0 0
        %905 = vmatpush1.bf16.msra.mxu0 0
        %906 = vmatprep.subr.bf16.mxu0 0
        %907 = vmatpush1.bf16.msra.mxu0 0
        %908 = vmatprep.subr.bf16.mxu0 0
        %909 = vmatpush1.bf16.msra.mxu0 0
        %910 = vmatprep.subr.bf16.mxu0 0
        %911 = vmatpush1.bf16.msra.mxu0 0
        %912 = vmatprep.subr.bf16.mxu0 0
        %913 = vmatpush1.bf16.msra.mxu0 0
        %914 = vmatprep.subr.bf16.mxu0 0
        %915 = vmatpush1.bf16.msra.mxu0 0
        %916 = vmatprep.subr.bf16.mxu0 0
        %917 = vmatpush1.bf16.msra.mxu0 0
        %918 = vmatprep.subr.bf16.mxu0 0
        %919 = vmatpush1.bf16.msra.mxu0 %v902
        %920 = vmatprep.subr.bf16.mxu0 0
        %921 = vmatpush2.bf16.msra.mxu0 0
        %922 = vmatprep.subr.bf16.mxu0 0
        %923 = vmatpush2.bf16.msra.mxu0 0
        %924 = vmatprep.subr.bf16.mxu0 0
        %925 = vmatpush2.bf16.msra.mxu0 0
        %926 = vmatprep.subr.bf16.mxu0 0
        %927 = vmatpush2.bf16.msra.mxu0 0
        %928 = vmatprep.subr.bf16.mxu0 0
        %929 = vmatpush2.bf16.msra.mxu0 0
        %930 = vmatprep.subr.bf16.mxu0 0
        %931 = vmatpush2.bf16.msra.mxu0 0
        %932 = vmatprep.subr.bf16.mxu0 0
        %933 = vmatpush2.bf16.msra.mxu0 0
        %934 = vmatprep.subr.bf16.mxu0 0
        %935 = vmatpush2.bf16.msra.mxu0 0
        %936 = vmatprep.mubr.bf16.mxu0 0
        %937 = vmatmul.mubr.bf16.gmra.mxu0 %v899
        %v938 = vpop.f32.mrf.mxu0
        %v939 = vadd.f32 0.0, %v938
        %v940 = vpop.f32.mrf.mxu0
        %v941 = vpop.f32.mrf.mxu0
        %v942 = vpop.f32.mrf.mxu0
        %943 = vdwg.mxu0
        %944 = vrot.lane.b32.xlu0 %v604, 104
        %v945 = vpop.permute.xlu0 %944
        %946 = vrot.lane.b32.xlu0 %v673, 104
        %v947 = vpop.permute.xlu0 %946
        %v949 = vsel %vm612, %v945, 0
        %v952 = vsel %vm612, %v947, 0
        %954 = vmatprep.subr.bf16.mxu0 0
        %955 = vmatpush1.bf16.xpose.msra.mxu0 0
        %956 = vmatprep.subr.bf16.mxu0 0
        %957 = vmatpush1.bf16.xpose.msra.mxu0 0
        %958 = vmatprep.subr.bf16.mxu0 0
        %959 = vmatpush1.bf16.xpose.msra.mxu0 0
        %960 = vmatprep.subr.bf16.mxu0 0
        %961 = vmatpush1.bf16.xpose.msra.mxu0 0
        %962 = vmatprep.subr.bf16.mxu0 0
        %963 = vmatpush1.bf16.xpose.msra.mxu0 0
        %964 = vmatprep.subr.bf16.mxu0 0
        %965 = vmatpush1.bf16.xpose.msra.mxu0 0
        %966 = vmatprep.subr.bf16.mxu0 0
        %967 = vmatpush1.bf16.xpose.msra.mxu0 0
        %968 = vmatprep.subr.bf16.mxu0 0
        %969 = vmatpush1.bf16.xpose.msra.mxu0 %v952
        %970 = vmatprep.subr.bf16.mxu0 0
        %971 = vmatpush2.bf16.xpose.msra.mxu0 0
        %972 = vmatprep.subr.bf16.mxu0 0
        %973 = vmatpush2.bf16.xpose.msra.mxu0 0
        %974 = vmatprep.subr.bf16.mxu0 0
        %975 = vmatpush2.bf16.xpose.msra.mxu0 0
        %976 = vmatprep.subr.bf16.mxu0 0
        %977 = vmatpush2.bf16.xpose.msra.mxu0 0
        %978 = vmatprep.subr.bf16.mxu0 0
        %979 = vmatpush2.bf16.xpose.msra.mxu0 0
        %980 = vmatprep.subr.bf16.mxu0 0
        %981 = vmatpush2.bf16.xpose.msra.mxu0 0
        %982 = vmatprep.subr.bf16.mxu0 0
        %983 = vmatpush2.bf16.xpose.msra.mxu0 0
        %984 = vmatprep.subr.bf16.mxu0 0
        %985 = vmatpush2.bf16.xpose.msra.mxu0 0
        %986 = vmatprep.mubr.bf16.mxu0 0
        %987 = vmatmul.mubr.bf16.gmra.mxu0 %v949
        %v988 = vpop.f32.mrf.mxu0
        %v989 = vadd.f32 %v610, %v988
        %v990 = vpop.f32.mrf.mxu0
        %v991 = vpop.f32.mrf.mxu0
        %v992 = vpop.f32.mrf.mxu0
        %993 = vdwg.mxu0
        %v994 = vsel %vm612, %v989, -inf
        %995 = vmax.xlane.f32.xlu0 %v994
        %v996 = vpop.xlane.xlu0 %995
        %v997 = vsub.f32 %v989, %v996
        %v998 = vmul.f32 %v997, 1.442695
        %v999 = vpow.pop %v998
        %v1000 = vsel %vm612, %v999, 0.0
        %1001 = vadd.xlane.f32.xlu0 %v1000
        %v1002 = vpop.xlane.xlu0 %1001
        %v1003 = vrcp.pop %v1002
        %v1004 = vmul.f32 %v999, %v1003
        %v1005 = vpack.c.bf16 %v1004, %v1004
        %1006 = vrot.lane.b32.xlu0 %v673, 72
        %v1007 = vpop.permute.xlu0 %1006
        %v1009 = vsel %vm612, %v1005, 0
        %v1012 = vsel %vm679, %v1007, 0
        %1014 = vmatprep.subr.bf16.mxu0 0
        %1015 = vmatpush1.bf16.msra.mxu0 0
        %1016 = vmatprep.subr.bf16.mxu0 0
        %1017 = vmatpush1.bf16.msra.mxu0 0
        %1018 = vmatprep.subr.bf16.mxu0 0
        %1019 = vmatpush1.bf16.msra.mxu0 0
        %1020 = vmatprep.subr.bf16.mxu0 0
        %1021 = vmatpush1.bf16.msra.mxu0 0
        %1022 = vmatprep.subr.bf16.mxu0 0
        %1023 = vmatpush1.bf16.msra.mxu0 0
        %1024 = vmatprep.subr.bf16.mxu0 0
        %1025 = vmatpush1.bf16.msra.mxu0 0
        %1026 = vmatprep.subr.bf16.mxu0 0
        %1027 = vmatpush1.bf16.msra.mxu0 0
        %1028 = vmatprep.subr.bf16.mxu0 0
        %1029 = vmatpush1.bf16.msra.mxu0 %v1012
        %1030 = vmatprep.subr.bf16.mxu0 0
        %1031 = vmatpush2.bf16.msra.mxu0 0
        %1032 = vmatprep.subr.bf16.mxu0 0
        %1033 = vmatpush2.bf16.msra.mxu0 0
        %1034 = vmatprep.subr.bf16.mxu0 0
        %1035 = vmatpush2.bf16.msra.mxu0 0
        %1036 = vmatprep.subr.bf16.mxu0 0
        %1037 = vmatpush2.bf16.msra.mxu0 0
        %1038 = vmatprep.subr.bf16.mxu0 0
        %1039 = vmatpush2.bf16.msra.mxu0 0
        %1040 = vmatprep.subr.bf16.mxu0 0
        %1041 = vmatpush2.bf16.msra.mxu0 0
        %1042 = vmatprep.subr.bf16.mxu0 0
        %1043 = vmatpush2.bf16.msra.mxu0 0
        %1044 = vmatprep.subr.bf16.mxu0 0
        %1045 = vmatpush2.bf16.msra.mxu0 0
        %1046 = vmatprep.mubr.bf16.mxu0 0
        %1047 = vmatmul.mubr.bf16.gmra.mxu0 %v1009
        %v1048 = vpop.f32.mrf.mxu0
        %v1049 = vadd.f32 0.0, %v1048
        %v1050 = vpop.f32.mrf.mxu0
        %v1051 = vpop.f32.mrf.mxu0
        %v1052 = vpop.f32.mrf.mxu0
        %1053 = vdwg.mxu0
        %1055 = vrot.lane.b32.xlu0 %v829, 8
        %v1056 = vpop.permute.xlu0 %1055
        %1059 = vrot.lane.b32.xlu0 %v939, 16
        %v1060 = vpop.permute.xlu0 %1059
        %1063 = vrot.lane.b32.xlu0 %v1049, 24
        %v1064 = vpop.permute.xlu0 %1063
        %v1066 = vsel %vm612, %v718, %v1056
        %vm1067 = vcmask 130048
        %v1068 = vsel %vm1067, %v1066, %v1060
        %vm1069 = vcmask 195584
        %v1070 = vsel %vm1069, %v1068, %v1064
        %v1071 = vpack.c.bf16 %v1070, %v1070
        %v1072 = vld [vmem:[#allocation11] sm:$0xf]
        %v1073 = vld [vmem:[#allocation11 + $0x4] sm:$0xf]
        %v1074 = vld [vmem:[#allocation11 + $0x8] sm:$0xf]
        %v1075 = vld [vmem:[#allocation11 + $0xc] sm:$0xf]
        %v1076 = vld [vmem:[%s8] sm:$0x1]
        %v1078 = vlaneseq
        %v1079 = vshrl.u32 %v1078, 7
        %v1080 = vsub.s32 0, %v1079
        %v1081 = vrot.slane %v1076, %v1080
        %v1087 = vunpack.c.l.b16 %v1072
        %v1088 = vunpack.c.l.b16 %v1073
        %v1089 = vunpack.c.l.b16 %v1074
        %v1090 = vunpack.c.l.b16 %v1075
        %v1091 = vpack.c.b16 %v1088, %v1087
        %v1092 = vpack.c.b16 %v1090, %v1089
        %v1096 = vsel %vm560, %v1071, 0
        %1098 = vmatprep.subr.bf16.mxu0 0
        %1099 = vmatpush1.bf16.msra.mxu0 0
        %1100 = vmatprep.subr.bf16.mxu0 0
        %1101 = vmatpush1.bf16.msra.mxu0 0
        %1102 = vmatprep.subr.bf16.mxu0 0
        %1103 = vmatpush1.bf16.msra.mxu0 0
        %1104 = vmatprep.subr.bf16.mxu0 0
        %1105 = vmatpush1.bf16.msra.mxu0 0
        %1106 = vmatprep.subr.bf16.mxu0 0
        %1107 = vmatpush1.bf16.msra.mxu0 0
        %1108 = vmatprep.subr.bf16.mxu0 0
        %1109 = vmatpush1.bf16.msra.mxu0 0
        %1110 = vmatprep.subr.bf16.mxu0 0
        %1111 = vmatpush1.bf16.msra.mxu0 %v1092
        %1112 = vmatprep.subr.bf16.mxu0 0
        %1113 = vmatpush1.bf16.msra.mxu0 %v1091
        %1114 = vmatprep.subr.bf16.mxu0 0
        %1115 = vmatpush2.bf16.msra.mxu0 0
        %1116 = vmatprep.subr.bf16.mxu0 0
        %1117 = vmatpush2.bf16.msra.mxu0 0
        %1118 = vmatprep.subr.bf16.mxu0 0
        %1119 = vmatpush2.bf16.msra.mxu0 0
        %1120 = vmatprep.subr.bf16.mxu0 0
        %1121 = vmatpush2.bf16.msra.mxu0 0
        %1122 = vmatprep.subr.bf16.mxu0 0
        %1123 = vmatpush2.bf16.msra.mxu0 0
        %1124 = vmatprep.subr.bf16.mxu0 0
        %1125 = vmatpush2.bf16.msra.mxu0 0
        %1126 = vmatprep.subr.bf16.mxu0 0
        %1127 = vmatpush2.bf16.msra.mxu0 0
        %1128 = vmatprep.subr.bf16.mxu0 0
        %1129 = vmatpush2.bf16.msra.mxu0 0
        %1130 = vmatprep.mubr.bf16.mxu0 0
        %1131 = vmatmul.mubr.bf16.gmra.mxu0 %v1096
        %v1132 = vpop.f32.mrf.mxu0
        %v1133 = vadd.f32 %v1081, %v1132
        %v1134 = vpop.f32.mrf.mxu0
        %v1135 = vpop.f32.mrf.mxu0
        %v1136 = vpop.f32.mrf.mxu0
        %1137 = vdwg.mxu0
        %1138 = vst.msk [vmem:[%s455] sm:$0xff] %vm560, %v1133
        %s1139 = sand.u32 %s258, 1
        %s1140 = scalar_lea.sflag [#allocation5], %s1139
        %s1141 = sand.u32 %s258, 1
        %s1142 = smul.addr %s1141, 8
        %s1143 = scalar_lea.vmem [#allocation12], %s1142
        // Predicated region
        $region81: #{tpu_custom_call.1} parent=55 // pred_check
          %p1144 = pneg %p268
        $region82: #{tpu_custom_call.1} parent=55 // pred_check_branch
          %1146 = sbr.rel (%p1144) target = $region84
        $region83: #{tpu_custom_call.1} parent=55 // pred_region
          %s1148 = ssub.s32 128, 128
          %1149 = vsyncadd %s1140, %s1148
          %s1150 = sadd.s32 %s35, %s34
          %s1151 = smul.addr %s1150, 128
          %s1152 = scalar_lea.hbm %s9, %s1151
          %s1154 = sshll.u32 %s1143, 4
          %s1155 = int_to_ptr.vmem [resolvable:$true] %s1154
          %1157 = dma.vmem_to_hbm [thread:$0]  %s1155, 128, %s1152, %s1140
        $region84: #{tpu_custom_call.1} parent=55 // pred_fallthru
          _
      $region56: #{tpu_custom_call.1} parent=5 // pred_fallthru
        _
      %p1158 = scmp.le.s32.totalorder 2, %s25
      // Predicated region
      $region85: #{tpu_custom_call.1} parent=5 // pred_check
        %p1159 = pneg %p1158
      $region86: #{tpu_custom_call.1} parent=5 // pred_check_branch
        %1161 = sbr.rel (%p1159) target = $region88
      $region87: #{tpu_custom_call.1} parent=5 // pred_region
        %s1162 = ssub.s32 %s25, 2
        // Predicated region
        $region89: #{tpu_custom_call.1} parent=87 // pred_check
          %p1163 = pneg %p274
        $region90: #{tpu_custom_call.1} parent=87 // pred_check_branch
          %1165 = sbr.rel (%p1163) target = $region92
        $region91: #{tpu_custom_call.1} parent=87 // pred_region
          %s1166 = sand.u32 %s259, 1
          %s1167 = scalar_lea.sflag [#allocation5], %s1166
          %s1168 = sand.u32 %s259, 1
          %s1169 = smul.addr %s1168, 8
          %s1170 = scalar_lea.vmem [#allocation12], %s1169
          %1171 = dma.done %s1167, 128
        $region92: #{tpu_custom_call.1} parent=87 // pred_fallthru
          _
      $region88: #{tpu_custom_call.1} parent=5 // pred_fallthru
        _
    $region6: #{tpu_custom_call.1} parent=1 // loop_footer
      %s29 = sadd.s32 1, %s25
    $region7: #{tpu_custom_call.1} parent=1 // loop_footer_branch
      %24 = sbr.rel target = $region3
    $region8: #{tpu_custom_call.1} parent=1 // loop_exit
      _
    %1172 = vsyncpa [#allocation4], 1
    %s1173 = scalar_lea.sflag [#allocation4], 1
    %1174 = vsyncpa %s1173, 1
    %1175 = vsyncpa [#allocation7], 1
    %s1176 = scalar_lea.sflag [#allocation7], 1
    %1177 = vsyncpa %s1176, 1
    %1178 = vsyncpa [#allocation10], 1
    %1179 = vsyncpa [#allocation5], 1
    %s1180 = scalar_lea.sflag [#allocation5], 1
    %1181 = vsyncpa %s1180, 1

</llo_original>
